<compile_context>
chip_gen: v7x
topology: tpu7x:2x2x1
jax: 0.10.0
libtpu: 0.0.40
codegen_flags: <defaults>
</compile_context>

<pallas_src>
import jax
import jax.numpy as jnp
from jax.experimental import pallas as pl
from jax.experimental.pallas import tpu as pltpu

BN_EPS = 1e-5  # PyTorch BatchNorm1d default eps


def _simclr_kernel(eps_ref, adj_ref, x0_ref, w1_ref, w2_ref, vec_ref, membT_ref,
                   wp1_ref, wp2_ref, bp1_ref, bp2_ref,
                   xs_ref, pool_ref, y_ref, h_scr, acc1_scr):
    """One grid step == one GIN layer (+ proj-head partial sum).

    pooled = adj @ h + (1 + eps) * h
    h1     = relu(pooled @ W1 + b1)          # mlp Linear 1 + ReLU
    h2     = relu(h1 @ W2 + b2)              # mlp Linear 2 + ReLU
    h3     = relu(h2 + conv_bias)            # conv bias + F.relu (outer relu idempotent)
    h      = BN(h3)                          # bns[l], training-mode batch stats
    pool_l = membT @ h                       # global_add_pool
    acc1  += pool_l @ Wp1[l]                 # proj_head Linear 1, per-layer block
    last step:  y = relu(acc1 + bp1) @ Wp2 + bp2
    """
    l = pl.program_id(0)

    @pl.when(l == 0)
    def _():
        h_scr[...] = x0_ref[...]                    # (zero-padded) input node features
        acc1_scr[...] = jnp.zeros_like(acc1_scr)    # proj-head Linear-1 accumulator

    h = h_scr[...]                                  # running node features, f32 [N, DIM]
    eps = eps_ref[l, 0]

    # GIN aggregation (bf16 MXU, f32 accumulate)
    agg = jnp.dot(adj_ref[...], h.astype(jnp.bfloat16),
                  preferred_element_type=jnp.float32)
    pooled = agg + (1.0 + eps) * h

    vecs = vec_ref[...]                             # [8, DIM] per-layer vector table (f32)
    b1, b2, cbias = vecs[0:1], vecs[1:2], vecs[2:3]
    gamma, beta = vecs[3:4], vecs[4:5]

    # mlp: Linear -> ReLU -> Linear -> ReLU
    h1 = jnp.dot(pooled.astype(jnp.bfloat16), w1_ref[...],
                 preferred_element_type=jnp.float32) + b1
    h1 = jnp.maximum(h1, 0.0)
    h2 = jnp.dot(h1.astype(jnp.bfloat16), w2_ref[...],
                 preferred_element_type=jnp.float32) + b2
    h2 = jnp.maximum(h2, 0.0)
    h3 = jnp.maximum(h2 + cbias, 0.0)               # conv bias + F.relu (outer relu no-op)

    # BatchNorm1d (training-mode batch stats, biased variance) via sum / sumsq.
    inv_n = 1.0 / h3.shape[0]
    s = jnp.sum(h3, axis=0, keepdims=True)
    ss = jnp.sum(h3 * h3, axis=0, keepdims=True)
    mean = s * inv_n
    var = ss * inv_n - mean * mean
    hbn = (h3 - mean) * jax.lax.rsqrt(var + BN_EPS) * gamma + beta

    h_scr[...] = hbn                                # carry to the next layer
    xs_ref[...] = hbn                               # lane-dense slice of cat(xs, 1)

    # global_add_pool as one-hot membership matmul; lane-dense slice of cat(xpool, 1)
    pool_l = jnp.dot(membT_ref[...], hbn.astype(jnp.bfloat16),
                     preferred_element_type=jnp.float32)
    pool_ref[...] = pool_l

    # proj_head Linear 1, accumulated per layer: cat(xpool,1) @ Wp1 == sum_l pool_l @ Wp1[l]
    acc1_scr[...] += jnp.dot(pool_l.astype(jnp.bfloat16), wp1_ref[...],
                             preferred_element_type=jnp.float32)

    @pl.when(l == pl.num_programs(0) - 1)
    def _():
        hid = jnp.maximum(acc1_scr[...] + bp1_ref[...], 0.0)     # + bias, ReLU
        y_ref[...] = jnp.dot(hid.astype(jnp.bfloat16), wp2_ref[...],
                             preferred_element_type=jnp.float32) + bp2_ref[...]


def simclr_forward(eps_all, adj_bf, x0p, w1_all, w2_all, vecs_all, membT_bf,
                   wp1_all, wp2, bp1, bp2):
    """Fused simclr.forward: y = proj_head(cat(xpool, 1)); also returns encoder outputs."""
    N, DIM = x0p.shape
    L = w1_all.shape[0]
    G = membT_bf.shape[0]
    E = L * DIM

    xs_cat, pool_cat, y = pl.pallas_call(
        _simclr_kernel,
        grid=(L,),
        in_specs=[
            pl.BlockSpec(memory_space=pltpu.MemorySpace.SMEM),        # eps   [L, 1]
            pl.BlockSpec((N, N), lambda l: (0, 0)),                   # adj   (resident)
            pl.BlockSpec((N, DIM), lambda l: (0, 0)),                 # x0    (padded)
            pl.BlockSpec((None, DIM, DIM), lambda l: (l, 0, 0)),      # W1[l]
            pl.BlockSpec((None, DIM, DIM), lambda l: (l, 0, 0)),      # W2[l]
            pl.BlockSpec((None, 8, DIM), lambda l: (l, 0, 0)),        # b1/b2/bias/gamma/beta[l]
            pl.BlockSpec((G, N), lambda l: (0, 0)),                   # membT (resident)
            pl.BlockSpec((None, DIM, E), lambda l: (l, 0, 0)),        # Wp1 row-block[l]
            pl.BlockSpec((E, E), lambda l: (0, 0)),                   # Wp2   (resident)
            pl.BlockSpec((1, E), lambda l: (0, 0)),                   # bp1
            pl.BlockSpec((1, E), lambda l: (0, 0)),                   # bp2
        ],
        out_specs=(
            pl.BlockSpec((N, DIM), lambda l: (0, l)),                 # cat(xs, 1)
            pl.BlockSpec((G, DIM), lambda l: (0, l)),                 # cat(xpool, 1)
            pl.BlockSpec((G, E), lambda l: (0, 0)),                   # proj_head output
        ),
        out_shape=(
            jax.ShapeDtypeStruct((N, E), jnp.float32),
            jax.ShapeDtypeStruct((G, E), jnp.float32),
            jax.ShapeDtypeStruct((G, E), jnp.float32),
        ),
        scratch_shapes=[
            pltpu.VMEM((N, DIM), jnp.float32),                        # running node features
            pltpu.VMEM((G, E), jnp.float32),                          # proj Linear-1 accumulator
        ],
        compiler_params=pltpu.CompilerParams(
            dimension_semantics=("arbitrary",),                       # layers are sequential
            vmem_limit_bytes=32 * 1024 * 1024),
    )(eps_all, adj_bf, x0p, w1_all, w2_all, vecs_all, membT_bf,
      wp1_all, wp2, bp1, bp2)
    return y, pool_cat, xs_cat


# --------------------------- pure-JAX reference ----------------------------
def _reference_forward(eps_all, adj_bf, x0p, w1_all, w2_all, vecs_all, membT_bf,
                       wp1, bp1, wp2, bp2):
    """Plain-JAX reference with identical bf16 matmul operand casting."""
    h = x0p
    xs, xpool = [], []
    L = w1_all.shape[0]
    for l in range(L):
        agg = jnp.dot(adj_bf, h.astype(jnp.bfloat16),
                      preferred_element_type=jnp.float32)
        pooled = agg + (1.0 + eps_all[l, 0]) * h
        b1, b2, cbias = vecs_all[l, 0:1], vecs_all[l, 1:2], vecs_all[l, 2:3]
        gamma, beta = vecs_all[l, 3:4], vecs_all[l, 4:5]
        h1 = jnp.maximum(jnp.dot(pooled.astype(jnp.bfloat16), w1_all[l],
                                 preferred_element_type=jnp.float32) + b1, 0.0)
        h2 = jnp.maximum(jnp.dot(h1.astype(jnp.bfloat16), w2_all[l],
                                 preferred_element_type=jnp.float32) + b2, 0.0)
        h3 = jnp.maximum(h2 + cbias, 0.0)
        m = h3.mean(0, keepdims=True)
        v = ((h3 - m) ** 2).mean(0, keepdims=True)
        h = (h3 - m) / jnp.sqrt(v + BN_EPS) * gamma + beta
        xs.append(h)
        xpool.append(jnp.dot(membT_bf, h.astype(jnp.bfloat16),
                             preferred_element_type=jnp.float32))
    xp = jnp.concatenate(xpool, axis=1)
    xn = jnp.concatenate(xs, axis=1)
    y = jnp.maximum(jnp.dot(xp.astype(jnp.bfloat16), wp1,
                            preferred_element_type=jnp.float32) + bp1, 0.0)
    y = jnp.dot(y.astype(jnp.bfloat16), wp2,
                preferred_element_type=jnp.float32) + bp2
    return y, xp, xn


# --------------------------------- main -------------------------------------
if __name__ == "__main__":
    key = jax.random.PRNGKey(0)

    # Small but MXU/lane-friendly sizes: N nodes, F input features, DIM hidden
    # (multiple of 128 -> lane-dense stores), L GIN layers, G graphs.
    N, F, DIM, L, G = 128, 16, 128, 3, 8
    E = DIM * L

    k_x, k_adj, k_p, k_h = jax.random.split(key, 4)

    # Node features [N, F], zero-padded along features to DIM so all layers
    # share the [DIM, DIM] weight layout (padding is exact: extra W1 rows = 0).
    x = jax.random.normal(k_x, (N, F), dtype=jnp.float32)
    x0p = jnp.zeros((N, DIM), jnp.float32).at[:, :F].set(x)

    # Dense 0/1 adjacency (stand-in for the sparse_coo_tensor); exact in bf16.
    adj_bf = (jax.random.uniform(k_adj, (N, N)) < 0.1).astype(jnp.bfloat16)

    # G graphs of N//G nodes each -> one-hot membership^T [G, N] for add-pool.
    batch = jnp.repeat(jnp.arange(G, dtype=jnp.int32), N // G)
    membT_bf = jax.nn.one_hot(batch, G, dtype=jnp.bfloat16).T

    # Per-layer parameters, stacked along a leading layer axis (synthetic init).
    eps_all = (0.05 * (jnp.arange(L, dtype=jnp.float32) + 1.0)).reshape(L, 1)
    w1_list, w2_list, vec_list = [], [], []
    pk = k_p
    for i in range(L):
        fin = F if i == 0 else DIM
        pk, *ks = jax.random.split(pk, 8)
        w1 = jnp.zeros((DIM, DIM), jnp.float32).at[:fin, :].set(
            0.1 * jax.random.normal(ks[0], (fin, DIM), jnp.float32))
        w2 = 0.1 * jax.random.normal(ks[1], (DIM, DIM), jnp.float32)
        vec = jnp.zeros((8, DIM), jnp.float32)
        vec = vec.at[0].set(0.1 * jax.random.normal(ks[2], (DIM,)))        # mlp b1
        vec = vec.at[1].set(0.1 * jax.random.normal(ks[3], (DIM,)))        # mlp b2
        vec = vec.at[2].set(0.1 * jax.random.normal(ks[4], (DIM,)))        # conv bias
        vec = vec.at[3].set(1.0 + 0.1 * jax.random.normal(ks[5], (DIM,)))  # BN gamma
        vec = vec.at[4].set(0.1 * jax.random.normal(ks[6], (DIM,)))        # BN beta
        w1_list.append(w1)
        w2_list.append(w2)
        vec_list.append(vec)
    w1_all = jnp.stack(w1_list).astype(jnp.bfloat16)
    w2_all = jnp.stack(w2_list).astype(jnp.bfloat16)
    vecs_all = jnp.stack(vec_list)

    # Projection head: Linear(E, E) -> ReLU -> Linear(E, E).
    kh = jax.random.split(k_h, 4)
    wp1 = (0.05 * jax.random.normal(kh[0], (E, E), jnp.float32)).astype(jnp.bfloat16)
    bp1 = 0.1 * jax.random.normal(kh[1], (1, E), jnp.float32)
    wp2 = (0.05 * jax.random.normal(kh[2], (E, E), jnp.float32)).astype(jnp.bfloat16)
    bp2 = 0.1 * jax.random.normal(kh[3], (1, E), jnp.float32)
    # Per-layer row blocks of Wp1 for the fused proj-head partial sums.
    wp1_all = wp1.reshape(L, DIM, E)

    fwd = jax.jit(simclr_forward)
    y, xpool, xnode = jax.block_until_ready(
        fwd(eps_all, adj_bf, x0p, w1_all, w2_all, vecs_all, membT_bf,
            wp1_all, wp2, bp1, bp2))

    # Sanity check against a plain-JAX reference (same bf16 matmul casting).
    ry, rpool, rnode = _reference_forward(
        eps_all, adj_bf, x0p, w1_all, w2_all, vecs_all, membT_bf,
        wp1, bp1, wp2, bp2)

    assert y.shape == (G, E) and xpool.shape == (G, E) and xnode.shape == (N, E)
    assert jnp.allclose(xnode, rnode, atol=1e-2, rtol=1e-2)
    assert jnp.allclose(xpool, rpool, atol=1e-2, rtol=1e-2)
    assert jnp.allclose(y, ry, atol=1e-2, rtol=1e-2)

    print("KERNEL_OK")
</pallas_src>

<mosaic_0001>
module attributes {stable_mosaic.version = 11 : i64} {
  func.func @_simclr_kernel(%arg0: i32, %arg1: memref<3x1xf32, #tpu.memory_space<smem>>, %arg2: memref<128x128xbf16, #tpu.memory_space<vmem>>, %arg3: memref<128x128xf32, #tpu.memory_space<vmem>>, %arg4: memref<1x128x128xbf16, #tpu.memory_space<vmem>>, %arg5: memref<1x128x128xbf16, #tpu.memory_space<vmem>>, %arg6: memref<1x8x128xf32, #tpu.memory_space<vmem>>, %arg7: memref<8x128xbf16, #tpu.memory_space<vmem>>, %arg8: memref<1x128x384xbf16, #tpu.memory_space<vmem>>, %arg9: memref<384x384xbf16, #tpu.memory_space<vmem>>, %arg10: memref<1x384xf32, #tpu.memory_space<vmem>>, %arg11: memref<1x384xf32, #tpu.memory_space<vmem>>, %arg12: memref<128x128xf32, #tpu.memory_space<vmem>>, %arg13: memref<8x128xf32, #tpu.memory_space<vmem>>, %arg14: memref<8x384xf32, #tpu.memory_space<vmem>>, %arg15: memref<128x128xf32, #tpu.memory_space<vmem>>, %arg16: memref<8x384xf32, #tpu.memory_space<vmem>>) attributes {dimension_semantics = [#tpu.dimension_semantics<arbitrary>], iteration_bounds = array<i64: 3>, scalar_prefetch = 0 : i64, scratch_operands = 2 : i64, tpu.core_type = #tpu.core_type<tc>, window_params = [{transform_indices = @transform_0, window_bounds = array<i64: 3, 1>}, {pipeline_mode = #tpu.pipeline_mode<synchronous>, transform_indices = @transform_1, window_bounds = array<i64: 128, 128>}, {pipeline_mode = #tpu.pipeline_mode<synchronous>, transform_indices = @transform_2, window_bounds = array<i64: 128, 128>}, {transform_indices = @transform_3, window_bounds = array<i64: 1, 128, 128>}, {transform_indices = @transform_4, window_bounds = array<i64: 1, 128, 128>}, {transform_indices = @transform_5, window_bounds = array<i64: 1, 8, 128>}, {pipeline_mode = #tpu.pipeline_mode<synchronous>, transform_indices = @transform_6, window_bounds = array<i64: 8, 128>}, {transform_indices = @transform_7, window_bounds = array<i64: 1, 128, 384>}, {pipeline_mode = #tpu.pipeline_mode<synchronous>, transform_indices = @transform_8, window_bounds = array<i64: 384, 384>}, {pipeline_mode = #tpu.pipeline_mode<synchronous>, transform_indices = @transform_9, window_bounds = array<i64: 1, 384>}, {pipeline_mode = #tpu.pipeline_mode<synchronous>, transform_indices = @transform_10, window_bounds = array<i64: 1, 384>}, {transform_indices = @transform_11, window_bounds = array<i64: 128, 128>}, {transform_indices = @transform_12, window_bounds = array<i64: 8, 128>}, {pipeline_mode = #tpu.pipeline_mode<synchronous>, transform_indices = @transform_13, window_bounds = array<i64: 8, 384>}]} {
    %c0_i32 = arith.constant 0 : i32
    %0 = arith.cmpi eq, %arg0, %c0_i32 : i32
    %1 = arith.extui %0 : i1 to i32
    %c0_i32_0 = arith.constant 0 : i32
    %2 = arith.cmpi ne, %1, %c0_i32_0 : i32
    scf.if %2 {
      %c0_43 = arith.constant 0 : index
      %c0_44 = arith.constant 0 : index
      %78 = vector.load %arg3[%c0_43, %c0_44] : memref<128x128xf32, #tpu.memory_space<vmem>>, vector<128x128xf32>
      %c0_45 = arith.constant 0 : index
      %c0_46 = arith.constant 0 : index
      %79 = vector.load %arg15[%c0_45, %c0_46] : memref<128x128xf32, #tpu.memory_space<vmem>>, vector<128x128xf32>
      tpu.vector_store %arg15[%c0_45, %c0_46], %78 {strides = array<i32>} : memref<128x128xf32, #tpu.memory_space<vmem>>, vector<128x128xf32>,
      %cst_47 = arith.constant 0.000000e+00 : f32
      %80 = vector.broadcast %cst_47 : f32 to vector<8x384xf32>
      %c0_48 = arith.constant 0 : index
      %c0_49 = arith.constant 0 : index
      %81 = vector.load %arg16[%c0_48, %c0_49] : memref<8x384xf32, #tpu.memory_space<vmem>>, vector<8x384xf32>
      tpu.vector_store %arg16[%c0_48, %c0_49], %80 {strides = array<i32>} : memref<8x384xf32, #tpu.memory_space<vmem>>, vector<8x384xf32>,
    } else {
    }
    %c0 = arith.constant 0 : index
    %c0_1 = arith.constant 0 : index
    %3 = vector.load %arg15[%c0, %c0_1] : memref<128x128xf32, #tpu.memory_space<vmem>>, vector<128x128xf32>
    %4 = arith.index_cast %arg0 : i32 to index
    %c0_2 = arith.constant 0 : index
    %5 = memref.load %arg1[%4, %c0_2] : memref<3x1xf32, #tpu.memory_space<smem>>
    %c0_3 = arith.constant 0 : index
    %c0_4 = arith.constant 0 : index
    %6 = vector.load %arg2[%c0_3, %c0_4] : memref<128x128xbf16, #tpu.memory_space<vmem>>, vector<128x128xbf16>
    %7 = arith.truncf %3 : vector<128x128xf32> to vector<128x128xbf16>
    %cst = arith.constant dense<0.000000e+00> : vector<128x128xf32>
    %8 = tpu.matmul %6, %7, %cst {dimension_numbers = #tpu.dot_dimension_numbers<[1], [0], [0], [1], [0, 0, 1, 1], [], []>} : vector<128x128xbf16>, vector<128x128xbf16>, vector<128x128xf32> -> vector<128x128xf32>
    %cst_5 = arith.constant 1.000000e+00 : f32
    %9 = arith.addf %cst_5, %5 : f32
    %10 = vector.broadcast %9 : f32 to vector<128x128xf32>
    %11 = arith.mulf %10, %3 : vector<128x128xf32>
    %12 = arith.addf %8, %11 : vector<128x128xf32>
    %c0_6 = arith.constant 0 : index
    %c0_7 = arith.constant 0 : index
    %c0_8 = arith.constant 0 : index
    %13 = vector.load %arg6[%c0_6, %c0_7, %c0_8] : memref<1x8x128xf32, #tpu.memory_space<vmem>>, vector<1x8x128xf32>
    %14 = vector.shape_cast %13 : vector<1x8x128xf32> to vector<8x128xf32>
    %15 = vector.extract_strided_slice %14 {offsets = [0, 0], sizes = [1, 128], strides = [1, 1]} : vector<8x128xf32> to vector<1x128xf32>
    %16 = vector.extract_strided_slice %14 {offsets = [1, 0], sizes = [1, 128], strides = [1, 1]} : vector<8x128xf32> to vector<1x128xf32>
    %17 = vector.extract_strided_slice %14 {offsets = [2, 0], sizes = [1, 128], strides = [1, 1]} : vector<8x128xf32> to vector<1x128xf32>
    %18 = vector.extract_strided_slice %14 {offsets = [3, 0], sizes = [1, 128], strides = [1, 1]} : vector<8x128xf32> to vector<1x128xf32>
    %19 = vector.extract_strided_slice %14 {offsets = [4, 0], sizes = [1, 128], strides = [1, 1]} : vector<8x128xf32> to vector<1x128xf32>
    %20 = arith.truncf %12 : vector<128x128xf32> to vector<128x128xbf16>
    %c0_9 = arith.constant 0 : index
    %c0_10 = arith.constant 0 : index
    %c0_11 = arith.constant 0 : index
    %21 = vector.load %arg4[%c0_9, %c0_10, %c0_11] : memref<1x128x128xbf16, #tpu.memory_space<vmem>>, vector<1x128x128xbf16>
    %22 = vector.shape_cast %21 : vector<1x128x128xbf16> to vector<128x128xbf16>
    %cst_12 = arith.constant dense<0.000000e+00> : vector<128x128xf32>
    %23 = tpu.matmul %20, %22, %cst_12 {dimension_numbers = #tpu.dot_dimension_numbers<[1], [0], [0], [1], [0, 0, 1, 1], [], []>} : vector<128x128xbf16>, vector<128x128xbf16>, vector<128x128xf32> -> vector<128x128xf32>
    %24 = vector.broadcast %15 : vector<1x128xf32> to vector<128x128xf32>
    %25 = arith.addf %23, %24 : vector<128x128xf32>
    %cst_13 = arith.constant 0.000000e+00 : f32
    %26 = vector.broadcast %cst_13 : f32 to vector<128x128xf32>
    %27 = arith.maximumf %25, %26 : vector<128x128xf32>
    %28 = arith.truncf %27 : vector<128x128xf32> to vector<128x128xbf16>
    %c0_14 = arith.constant 0 : index
    %c0_15 = arith.constant 0 : index
    %c0_16 = arith.constant 0 : index
    %29 = vector.load %arg5[%c0_14, %c0_15, %c0_16] : memref<1x128x128xbf16, #tpu.memory_space<vmem>>, vector<1x128x128xbf16>
    %30 = vector.shape_cast %29 : vector<1x128x128xbf16> to vector<128x128xbf16>
    %cst_17 = arith.constant dense<0.000000e+00> : vector<128x128xf32>
    %31 = tpu.matmul %28, %30, %cst_17 {dimension_numbers = #tpu.dot_dimension_numbers<[1], [0], [0], [1], [0, 0, 1, 1], [], []>} : vector<128x128xbf16>, vector<128x128xbf16>, vector<128x128xf32> -> vector<128x128xf32>
    %32 = vector.broadcast %16 : vector<1x128xf32> to vector<128x128xf32>
    %33 = arith.addf %31, %32 : vector<128x128xf32>
    %cst_18 = arith.constant 0.000000e+00 : f32
    %34 = vector.broadcast %cst_18 : f32 to vector<128x128xf32>
    %35 = arith.maximumf %33, %34 : vector<128x128xf32>
    %36 = vector.broadcast %17 : vector<1x128xf32> to vector<128x128xf32>
    %37 = arith.addf %35, %36 : vector<128x128xf32>
    %cst_19 = arith.constant 0.000000e+00 : f32
    %38 = vector.broadcast %cst_19 : f32 to vector<128x128xf32>
    %39 = arith.maximumf %37, %38 : vector<128x128xf32>
    %cst_20 = arith.constant dense<0.000000e+00> : vector<128xf32>
    %40 = vector.multi_reduction <add>, %39, %cst_20 [0] : vector<128x128xf32> to vector<128xf32>
    %41 = vector.shape_cast %40 : vector<128xf32> to vector<1x128xf32>
    %42 = arith.mulf %39, %39 : vector<128x128xf32>
    %cst_21 = arith.constant dense<0.000000e+00> : vector<128xf32>
    %43 = vector.multi_reduction <add>, %42, %cst_21 [0] : vector<128x128xf32> to vector<128xf32>
    %44 = vector.shape_cast %43 : vector<128xf32> to vector<1x128xf32>
    %cst_22 = arith.constant 7.812500e-03 : f32
    %45 = vector.broadcast %cst_22 : f32 to vector<1x128xf32>
    %46 = arith.mulf %41, %45 : vector<1x128xf32>
    %cst_23 = arith.constant 7.812500e-03 : f32
    %47 = vector.broadcast %cst_23 : f32 to vector<1x128xf32>
    %48 = arith.mulf %44, %47 : vector<1x128xf32>
    %49 = arith.mulf %46, %46 : vector<1x128xf32>
    %50 = arith.subf %48, %49 : vector<1x128xf32>
    %51 = vector.broadcast %46 : vector<1x128xf32> to vector<128x128xf32>
    %52 = arith.subf %39, %51 : vector<128x128xf32>
    %cst_24 = arith.constant 9.99999974E-6 : f32
    %53 = vector.broadcast %cst_24 : f32 to vector<1x128xf32>
    %54 = arith.addf %50, %53 : vector<1x128xf32>
    %55 = math.rsqrt %54 : vector<1x128xf32>
    %56 = vector.broadcast %55 : vector<1x128xf32> to vector<128x128xf32>
    %57 = arith.mulf %52, %56 : vector<128x128xf32>
    %58 = vector.broadcast %18 : vector<1x128xf32> to vector<128x128xf32>
    %59 = arith.mulf %57, %58 : vector<128x128xf32>
    %60 = vector.broadcast %19 : vector<1x128xf32> to vector<128x128xf32>
    %61 = arith.addf %59, %60 : vector<128x128xf32>
    %c0_25 = arith.constant 0 : index
    %c0_26 = arith.constant 0 : index
    %62 = vector.load %arg15[%c0_25, %c0_26] : memref<128x128xf32, #tpu.memory_space<vmem>>, vector<128x128xf32>
    tpu.vector_store %arg15[%c0_25, %c0_26], %61 {strides = array<i32>} : memref<128x128xf32, #tpu.memory_space<vmem>>, vector<128x128xf32>,
    %c0_27 = arith.constant 0 : index
    %c0_28 = arith.constant 0 : index
    %63 = vector.load %arg12[%c0_27, %c0_28] : memref<128x128xf32, #tpu.memory_space<vmem>>, vector<128x128xf32>
    tpu.vector_store %arg12[%c0_27, %c0_28], %61 {strides = array<i32>} : memref<128x128xf32, #tpu.memory_space<vmem>>, vector<128x128xf32>,
    %c0_29 = arith.constant 0 : index
    %c0_30 = arith.constant 0 : index
    %64 = vector.load %arg7[%c0_29, %c0_30] : memref<8x128xbf16, #tpu.memory_space<vmem>>, vector<8x128xbf16>
    %65 = arith.truncf %61 : vector<128x128xf32> to vector<128x128xbf16>
    %cst_31 = arith.constant dense<0.000000e+00> : vector<8x128xf32>
    %66 = tpu.matmul %64, %65, %cst_31 {dimension_numbers = #tpu.dot_dimension_numbers<[1], [0], [0], [1], [0, 0, 1, 1], [], []>} : vector<8x128xbf16>, vector<128x128xbf16>, vector<8x128xf32> -> vector<8x128xf32>
    %c0_32 = arith.constant 0 : index
    %c0_33 = arith.constant 0 : index
    %67 = vector.load %arg13[%c0_32, %c0_33] : memref<8x128xf32, #tpu.memory_space<vmem>>, vector<8x128xf32>
    tpu.vector_store %arg13[%c0_32, %c0_33], %66 {strides = array<i32>} : memref<8x128xf32, #tpu.memory_space<vmem>>, vector<8x128xf32>,
    %c0_34 = arith.constant 0 : index
    %c0_35 = arith.constant 0 : index
    %68 = vector.load %arg16[%c0_34, %c0_35] : memref<8x384xf32, #tpu.memory_space<vmem>>, vector<8x384xf32>
    %69 = arith.truncf %66 : vector<8x128xf32> to vector<8x128xbf16>
    %c0_36 = arith.constant 0 : index
    %c0_37 = arith.constant 0 : index
    %c0_38 = arith.constant 0 : index
    %70 = vector.load %arg8[%c0_36, %c0_37, %c0_38] : memref<1x128x384xbf16, #tpu.memory_space<vmem>>, vector<1x128x384xbf16>
    %71 = vector.shape_cast %70 : vector<1x128x384xbf16> to vector<128x384xbf16>
    %cst_39 = arith.constant dense<0.000000e+00> : vector<8x384xf32>
    %72 = tpu.matmul %69, %71, %cst_39 {dimension_numbers = #tpu.dot_dimension_numbers<[1], [0], [0], [1], [0, 0, 1, 1], [], []>} : vector<8x128xbf16>, vector<128x384xbf16>, vector<8x384xf32> -> vector<8x384xf32>
    %73 = arith.addf %68, %72 : vector<8x384xf32>
    %c0_40 = arith.constant 0 : index
    %c0_41 = arith.constant 0 : index
    %74 = vector.load %arg16[%c0_40, %c0_41] : memref<8x384xf32, #tpu.memory_space<vmem>>, vector<8x384xf32>
    tpu.vector_store %arg16[%c0_40, %c0_41], %73 {strides = array<i32>} : memref<8x384xf32, #tpu.memory_space<vmem>>, vector<8x384xf32>,
    %c2_i32 = arith.constant 2 : i32
    %75 = arith.cmpi eq, %arg0, %c2_i32 : i32
    %76 = arith.extui %75 : i1 to i32
    %c0_i32_42 = arith.constant 0 : i32
    %77 = arith.cmpi ne, %76, %c0_i32_42 : i32
    scf.if %77 {
      %c0_43 = arith.constant 0 : index
      %c0_44 = arith.constant 0 : index
      %78 = vector.load %arg16[%c0_43, %c0_44] : memref<8x384xf32, #tpu.memory_space<vmem>>, vector<8x384xf32>
      %c0_45 = arith.constant 0 : index
      %c0_46 = arith.constant 0 : index
      %79 = vector.load %arg10[%c0_45, %c0_46] : memref<1x384xf32, #tpu.memory_space<vmem>>, vector<1x384xf32>
      %80 = vector.broadcast %79 : vector<1x384xf32> to vector<8x384xf32>
      %81 = arith.addf %78, %80 : vector<8x384xf32>
      %cst_47 = arith.constant 0.000000e+00 : f32
      %82 = vector.broadcast %cst_47 : f32 to vector<8x384xf32>
      %83 = arith.maximumf %81, %82 : vector<8x384xf32>
      %84 = arith.truncf %83 : vector<8x384xf32> to vector<8x384xbf16>
      %c0_48 = arith.constant 0 : index
      %c0_49 = arith.constant 0 : index
      %85 = vector.load %arg9[%c0_48, %c0_49] : memref<384x384xbf16, #tpu.memory_space<vmem>>, vector<384x384xbf16>
      %cst_50 = arith.constant dense<0.000000e+00> : vector<8x384xf32>
      %86 = tpu.matmul %84, %85, %cst_50 {dimension_numbers = #tpu.dot_dimension_numbers<[1], [0], [0], [1], [0, 0, 1, 1], [], []>} : vector<8x384xbf16>, vector<384x384xbf16>, vector<8x384xf32> -> vector<8x384xf32>
      %c0_51 = arith.constant 0 : index
      %c0_52 = arith.constant 0 : index
      %87 = vector.load %arg11[%c0_51, %c0_52] : memref<1x384xf32, #tpu.memory_space<vmem>>, vector<1x384xf32>
      %88 = vector.broadcast %87 : vector<1x384xf32> to vector<8x384xf32>
      %89 = arith.addf %86, %88 : vector<8x384xf32>
      %c0_53 = arith.constant 0 : index
      %c0_54 = arith.constant 0 : index
      %90 = vector.load %arg14[%c0_53, %c0_54] : memref<8x384xf32, #tpu.memory_space<vmem>>, vector<8x384xf32>
      tpu.vector_store %arg14[%c0_53, %c0_54], %89 {strides = array<i32>} : memref<8x384xf32, #tpu.memory_space<vmem>>, vector<8x384xf32>,
    } else {
    }
    return
  }
  func.func @transform_0(%arg0: i32) -> (i32, i32) {
    %c0_i32 = arith.constant 0 : i32
    %c0_i32_0 = arith.constant 0 : i32
    %c0_i32_1 = arith.constant 0 : i32
    return %c0_i32, %c0_i32_0 : i32, i32
  }
  func.func @transform_1(%arg0: i32) -> (i32, i32) {
    %c0_i32 = arith.constant 0 : i32
    %c0_i32_0 = arith.constant 0 : i32
    %c0_i32_1 = arith.constant 0 : i32
    return %c0_i32, %c0_i32_0 : i32, i32
  }
  func.func @transform_2(%arg0: i32) -> (i32, i32) {
    %c0_i32 = arith.constant 0 : i32
    %c0_i32_0 = arith.constant 0 : i32
    %c0_i32_1 = arith.constant 0 : i32
    return %c0_i32, %c0_i32_0 : i32, i32
  }
  func.func @transform_3(%arg0: i32) -> (i32, i32, i32) {
    %c0_i32 = arith.constant 0 : i32
    %c0_i32_0 = arith.constant 0 : i32
    %c0_i32_1 = arith.constant 0 : i32
    return %arg0, %c0_i32, %c0_i32_0 : i32, i32, i32
  }
  func.func @transform_4(%arg0: i32) -> (i32, i32, i32) {
    %c0_i32 = arith.constant 0 : i32
    %c0_i32_0 = arith.constant 0 : i32
    %c0_i32_1 = arith.constant 0 : i32
    return %arg0, %c0_i32, %c0_i32_0 : i32, i32, i32
  }
  func.func @transform_5(%arg0: i32) -> (i32, i32, i32) {
    %c0_i32 = arith.constant 0 : i32
    %c0_i32_0 = arith.constant 0 : i32
    %c0_i32_1 = arith.constant 0 : i32
    return %arg0, %c0_i32, %c0_i32_0 : i32, i32, i32
  }
  func.func @transform_6(%arg0: i32) -> (i32, i32) {
    %c0_i32 = arith.constant 0 : i32
    %c0_i32_0 = arith.constant 0 : i32
    %c0_i32_1 = arith.constant 0 : i32
    return %c0_i32, %c0_i32_0 : i32, i32
  }
  func.func @transform_7(%arg0: i32) -> (i32, i32, i32) {
    %c0_i32 = arith.constant 0 : i32
    %c0_i32_0 = arith.constant 0 : i32
    %c0_i32_1 = arith.constant 0 : i32
    return %arg0, %c0_i32, %c0_i32_0 : i32, i32, i32
  }
  func.func @transform_8(%arg0: i32) -> (i32, i32) {
    %c0_i32 = arith.constant 0 : i32
    %c0_i32_0 = arith.constant 0 : i32
    %c0_i32_1 = arith.constant 0 : i32
    return %c0_i32, %c0_i32_0 : i32, i32
  }
  func.func @transform_9(%arg0: i32) -> (i32, i32) {
    %c0_i32 = arith.constant 0 : i32
    %c0_i32_0 = arith.constant 0 : i32
    %c0_i32_1 = arith.constant 0 : i32
    return %c0_i32, %c0_i32_0 : i32, i32
  }
  func.func @transform_10(%arg0: i32) -> (i32, i32) {
    %c0_i32 = arith.constant 0 : i32
    %c0_i32_0 = arith.constant 0 : i32
    %c0_i32_1 = arith.constant 0 : i32
    return %c0_i32, %c0_i32_0 : i32, i32
  }
  func.func @transform_11(%arg0: i32) -> (i32, i32) {
    %c0_i32 = arith.constant 0 : i32
    %c0_i32_0 = arith.constant 0 : i32
    return %c0_i32, %arg0 : i32, i32
  }
  func.func @transform_12(%arg0: i32) -> (i32, i32) {
    %c0_i32 = arith.constant 0 : i32
    %c0_i32_0 = arith.constant 0 : i32
    return %c0_i32, %arg0 : i32, i32
  }
  func.func @transform_13(%arg0: i32) -> (i32, i32) {
    %c0_i32 = arith.constant 0 : i32
    %c0_i32_0 = arith.constant 0 : i32
    %c0_i32_1 = arith.constant 0 : i32
    return %c0_i32, %c0_i32_0 : i32, i32
  }
}

</mosaic_0001>

<llo_original>
// kernel: simclr_forward.1
$region0: #{simclr_forward.1}
  #allocation0 [shape = 'u32[]', space=smem, size = 0x4, offset = 0x4, fixed_abs, tag = 'smem constant byte address 0x4 - core index']
  #allocation1 [shape = 'u32[144,128]{1,0:T(1,128)}', space=vmem, size = 0x12000, scoped, tag = 'internal scratch']
  #allocation2 [shape = 'f32[128,128]{1,0:T(8,128)}', space=vmem, size = 0x10000, scoped, tag = 'scratch operand']
  #allocation3 [shape = 'f32[8,384]{1,0:T(8,128)}', space=vmem, size = 0x3000, scoped, tag = 'scratch operand']
  %s0 = inlined_call_operand.vmem [shape: f32[3,1], index: 0, kind: input, shape index: {}]
  %s1 = inlined_call_operand.hbm [shape: bf16[128,128], index: 1, kind: input, shape index: {}]
  %s2 = inlined_call_operand.hbm [shape: f32[128,128], index: 2, kind: input, shape index: {}]
  %s3 = inlined_call_operand.hbm [shape: bf16[3,128,128], index: 3, kind: input, shape index: {}]
  %s4 = inlined_call_operand.hbm [shape: bf16[3,128,128], index: 4, kind: input, shape index: {}]
  %s5 = inlined_call_operand.hbm [shape: f32[3,8,128], index: 5, kind: input, shape index: {}]
  %s6 = inlined_call_operand.vmem [shape: bf16[8,128], index: 6, kind: input, shape index: {}]
  %s7 = inlined_call_operand.hbm [shape: bf16[3,128,384], index: 7, kind: input, shape index: {}]
  %s8 = inlined_call_operand.hbm [shape: bf16[384,384], index: 8, kind: input, shape index: {}]
  %s9 = inlined_call_operand.vmem [shape: f32[1,384], index: 9, kind: input, shape index: {}]
  %s10 = inlined_call_operand.vmem [shape: f32[1,384], index: 10, kind: input, shape index: {}]
  %s11 = inlined_call_operand.hbm [shape: f32[128,384], index: 11, kind: output, shape index: {0}]
  %s12 = inlined_call_operand.hbm [shape: f32[8,384], index: 12, kind: output, shape index: {1}]
  %s13 = inlined_call_operand.hbm [shape: f32[8,384], index: 13, kind: output, shape index: {2}]
  %14 = xla_tuple %s11, %s12, %s13
  %s15 = sld [smem:[#allocation0]]
  $region133: #{simclr_forward.1} parent=0
    _
  %s17 = ssub.s32 1, %s15
  %s18 = scalar_select 0, %s17, %s15
  $region1: #{simclr_forward.1} parent=0
    #allocation4 [shape = 'u8[2048]{0}', space=smem, size = 0x800, scoped, tag = 'input window, operand 0, single buffered']
    #allocation5 [shape = 's32[2]{0}', space=sflag, size = 0x8, scoped, tag = 'scoped memory for simclr_forward.1']
    #allocation6 [shape = 's32[2]{0}', space=sflag, size = 0x8, scoped, tag = 'scoped memory for simclr_forward.1']
    #allocation7 [shape = 's32[2]{0}', space=sflag, size = 0x8, scoped, tag = 'scoped memory for simclr_forward.1']
    #allocation8 [shape = 'u8[32768]{0}', space=vmem, size = 0x8000, scoped, tag = 'input window, operand 1, single buffered']
    #allocation9 [shape = 'u8[65536]{0}', space=vmem, size = 0x10000, scoped, tag = 'input window, operand 2, single buffered']
    #allocation10 [shape = 's32[1]{0}', space=sflag, size = 0x4, scoped, tag = 'scoped memory for simclr_forward.1']
    #allocation11 [shape = 'u8[65536]{0}', space=vmem, size = 0x10000, scoped, tag = 'input window, operand 3']
    #allocation12 [shape = 'u8[65536]{0}', space=vmem, size = 0x10000, scoped, tag = 'input window, operand 4']
    #allocation13 [shape = 'u8[8192]{0}', space=vmem, size = 0x2000, scoped, tag = 'input window, operand 5']
    #allocation14 [shape = 'u8[196608]{0}', space=vmem, size = 0x30000, scoped, tag = 'input window, operand 7']
    #allocation15 [shape = 'u8[294912]{0}', space=vmem, size = 0x48000, scoped, tag = 'input window, operand 8, single buffered']
    #allocation16 [shape = 'u8[131072]{0}', space=vmem, size = 0x20000, scoped, tag = 'output window, operand 0']
    #allocation17 [shape = 'u8[8192]{0}', space=vmem, size = 0x2000, scoped, tag = 'output window, operand 1']
    #allocation18 [shape = 's32[2]{0}', space=sflag, size = 0x8, scoped, tag = 'scoped memory for simclr_forward.1']
    #allocation19 [shape = 'u8[12288]{0}', space=vmem, size = 0x3000, scoped, tag = 'output window, operand 2, single buffered']
    %19 = vsyncpa [#allocation7], 0
    %20 = vsyncpa [#allocation5], 0
    %21 = vsyncpa [#allocation10], 0
    %22 = vsyncpa [#allocation6], 0
    %s23 = scalar_lea.sflag [#allocation6], 1
    %24 = vsyncpa %s23, 0
    %25 = vsyncpa [#allocation18], 0
    %s26 = scalar_lea.sflag [#allocation18], 1
    %27 = vsyncpa %s26, 0
    loop: start=0, step=1, limit=5
    $region2: #{simclr_forward.1} parent=1 // loop_pre_header
      _
    $region3: #{simclr_forward.1} parent=1 // loop_header
      %s29 = sphi 0, %s33
      %p30 = scmp.ge.s32.totalorder %s29, 5
      %s37 = sphi 0, %s37
      %s39 = sphi 0, %s37
      %s40 = sphi 0, %s39
      %s54 = sphi 0, %s40
      %s58 = sphi 0, %s58
      %s60 = sphi 0, %s58
      %s61 = sphi 0, %s60
      %s75 = sphi 0, %s61
      %s79 = sphi 0, %s79
      %s81 = sphi 0, %s79
      %s82 = sphi 0, %s81
      %s96 = sphi 0, %s82
      %s102 = sphi 0, %s104
      %s105 = sphi 0, %s102
      %s106 = sphi 0, %s105
      %s122 = sphi 0, %s106
      %s128 = sphi 0, %s130
      %s131 = sphi 0, %s128
      %s132 = sphi 0, %s131
      %s148 = sphi 0, %s132
      %s154 = sphi 0, %s156
      %s157 = sphi 0, %s154
      %s158 = sphi 0, %s157
      %s174 = sphi 0, %s158
      %s178 = sphi 0, %s178
      %s180 = sphi 0, %s178
      %s181 = sphi 0, %s180
      %s195 = sphi 0, %s181
      %s201 = sphi 0, %s203
      %s204 = sphi 0, %s201
      %s205 = sphi 0, %s204
      %s221 = sphi 0, %s205
      %s225 = sphi 0, %s225
      %s227 = sphi 0, %s225
      %s228 = sphi 0, %s227
      %s242 = sphi 0, %s228
      %s246 = sphi 0, %s246
      %s248 = sphi 0, %s246
      %s249 = sphi 0, %s248
      %s263 = sphi 0, %s249
      %s267 = sphi 0, %s267
      %s269 = sphi 0, %s267
      %s270 = sphi 0, %s269
      %s284 = sphi 0, %s270
      %s290 = sphi 0, %s292
      %s293 = sphi 0, %s290
      %s294 = sphi 0, %s293
      %s310 = sphi 0, %s294
      %s316 = sphi 0, %s318
      %s319 = sphi 0, %s316
      %s320 = sphi 0, %s319
      %s336 = sphi 0, %s320
      %s340 = sphi 0, %s340
      %s342 = sphi 0, %s340
      %s343 = sphi 0, %s342
      %s357 = sphi 0, %s343
    $region4: #{simclr_forward.1} parent=1 // loop_header_branch
      %32 = sbr.rel (%p30) target = $region8
    $region5: #{simclr_forward.1} parent=1 // loop_body
      %s34 = ssub.s32 %s29, 1
      %s35 = ssub.s32 %s29, 2
      %s36 = sadd.s32 %s29, 1
      %s38 = sadd.s32 %s37, 1
      %p41 = scmp.eq.s32.totalorder %s29, 2
      %p42 = scmp.ne.s32.totalorder %s37, %s39
      %p43 = scmp.eq.s32.totalorder %s29, 0
      %p44 = por %p42, %p43
      %p45 = scmp.ne.s32.totalorder %s37, %s39
      %p46 = scmp.eq.s32.totalorder %s34, 2
      %p47 = por %p45, %p46
      %p48 = scmp.ne.s32.totalorder %s39, %s40
      %p49 = scmp.eq.s32.totalorder %s34, 0
      %p50 = por %p48, %p49
      %p51 = scmp.ne.s32.totalorder %s39, %s40
      %p52 = scmp.eq.s32.totalorder %s35, 2
      %p53 = por %p51, %p52
      %p55 = scmp.ne.s32.totalorder %s40, %s54
      %p56 = scmp.eq.s32.totalorder %s35, 0
      %p57 = por %p55, %p56
      %s59 = sadd.s32 %s58, 1
      %p62 = scmp.eq.s32.totalorder %s29, 2
      %p63 = scmp.ne.s32.totalorder %s58, %s60
      %p64 = scmp.eq.s32.totalorder %s29, 0
      %p65 = por %p63, %p64
      %p66 = scmp.ne.s32.totalorder %s58, %s60
      %p67 = scmp.eq.s32.totalorder %s34, 2
      %p68 = por %p66, %p67
      %p69 = scmp.ne.s32.totalorder %s60, %s61
      %p70 = scmp.eq.s32.totalorder %s34, 0
      %p71 = por %p69, %p70
      %p72 = scmp.ne.s32.totalorder %s60, %s61
      %p73 = scmp.eq.s32.totalorder %s35, 2
      %p74 = por %p72, %p73
      %p76 = scmp.ne.s32.totalorder %s61, %s75
      %p77 = scmp.eq.s32.totalorder %s35, 0
      %p78 = por %p76, %p77
      %s80 = sadd.s32 %s79, 1
      %p83 = scmp.eq.s32.totalorder %s29, 2
      %p84 = scmp.ne.s32.totalorder %s79, %s81
      %p85 = scmp.eq.s32.totalorder %s29, 0
      %p86 = por %p84, %p85
      %p87 = scmp.ne.s32.totalorder %s79, %s81
      %p88 = scmp.eq.s32.totalorder %s34, 2
      %p89 = por %p87, %p88
      %p90 = scmp.ne.s32.totalorder %s81, %s82
      %p91 = scmp.eq.s32.totalorder %s34, 0
      %p92 = por %p90, %p91
      %p93 = scmp.ne.s32.totalorder %s81, %s82
      %p94 = scmp.eq.s32.totalorder %s35, 2
      %p95 = por %p93, %p94
      %p97 = scmp.ne.s32.totalorder %s82, %s96
      %p98 = scmp.eq.s32.totalorder %s35, 0
      %p99 = por %p97, %p98
      %s100 = ssub.s32 %s29, %s36
      %p101 = scmp.eq.s32.totalorder %s100, 0
      %s103 = sadd.s32 %s102, 1
      %s104 = scalar_select %p101, %s102, %s103
      %p107 = pneg %p101
      %p108 = scmp.eq.s32.totalorder %s29, 2
      %p109 = por %p107, %p108
      %p110 = scmp.ne.s32.totalorder %s102, %s105
      %p111 = scmp.eq.s32.totalorder %s29, 0
      %p112 = por %p110, %p111
      %p113 = scmp.ne.s32.totalorder %s102, %s105
      %p114 = scmp.eq.s32.totalorder %s34, 2
      %p115 = por %p113, %p114
      %p116 = scmp.ne.s32.totalorder %s105, %s106
      %p117 = scmp.eq.s32.totalorder %s34, 0
      %p118 = por %p116, %p117
      %p119 = scmp.ne.s32.totalorder %s105, %s106
      %p120 = scmp.eq.s32.totalorder %s35, 2
      %p121 = por %p119, %p120
      %p123 = scmp.ne.s32.totalorder %s106, %s122
      %p124 = scmp.eq.s32.totalorder %s35, 0
      %p125 = por %p123, %p124
      %s126 = ssub.s32 %s29, %s36
      %p127 = scmp.eq.s32.totalorder %s126, 0
      %s129 = sadd.s32 %s128, 1
      %s130 = scalar_select %p127, %s128, %s129
      %p133 = pneg %p127
      %p134 = scmp.eq.s32.totalorder %s29, 2
      %p135 = por %p133, %p134
      %p136 = scmp.ne.s32.totalorder %s128, %s131
      %p137 = scmp.eq.s32.totalorder %s29, 0
      %p138 = por %p136, %p137
      %p139 = scmp.ne.s32.totalorder %s128, %s131
      %p140 = scmp.eq.s32.totalorder %s34, 2
      %p141 = por %p139, %p140
      %p142 = scmp.ne.s32.totalorder %s131, %s132
      %p143 = scmp.eq.s32.totalorder %s34, 0
      %p144 = por %p142, %p143
      %p145 = scmp.ne.s32.totalorder %s131, %s132
      %p146 = scmp.eq.s32.totalorder %s35, 2
      %p147 = por %p145, %p146
      %p149 = scmp.ne.s32.totalorder %s132, %s148
      %p150 = scmp.eq.s32.totalorder %s35, 0
      %p151 = por %p149, %p150
      %s152 = ssub.s32 %s29, %s36
      %p153 = scmp.eq.s32.totalorder %s152, 0
      %s155 = sadd.s32 %s154, 1
      %s156 = scalar_select %p153, %s154, %s155
      %p159 = pneg %p153
      %p160 = scmp.eq.s32.totalorder %s29, 2
      %p161 = por %p159, %p160
      %p162 = scmp.ne.s32.totalorder %s154, %s157
      %p163 = scmp.eq.s32.totalorder %s29, 0
      %p164 = por %p162, %p163
      %p165 = scmp.ne.s32.totalorder %s154, %s157
      %p166 = scmp.eq.s32.totalorder %s34, 2
      %p167 = por %p165, %p166
      %p168 = scmp.ne.s32.totalorder %s157, %s158
      %p169 = scmp.eq.s32.totalorder %s34, 0
      %p170 = por %p168, %p169
      %p171 = scmp.ne.s32.totalorder %s157, %s158
      %p172 = scmp.eq.s32.totalorder %s35, 2
      %p173 = por %p171, %p172
      %p175 = scmp.ne.s32.totalorder %s158, %s174
      %p176 = scmp.eq.s32.totalorder %s35, 0
      %p177 = por %p175, %p176
      %s179 = sadd.s32 %s178, 1
      %p182 = scmp.eq.s32.totalorder %s29, 2
      %p183 = scmp.ne.s32.totalorder %s178, %s180
      %p184 = scmp.eq.s32.totalorder %s29, 0
      %p185 = por %p183, %p184
      %p186 = scmp.ne.s32.totalorder %s178, %s180
      %p187 = scmp.eq.s32.totalorder %s34, 2
      %p188 = por %p186, %p187
      %p189 = scmp.ne.s32.totalorder %s180, %s181
      %p190 = scmp.eq.s32.totalorder %s34, 0
      %p191 = por %p189, %p190
      %p192 = scmp.ne.s32.totalorder %s180, %s181
      %p193 = scmp.eq.s32.totalorder %s35, 2
      %p194 = por %p192, %p193
      %p196 = scmp.ne.s32.totalorder %s181, %s195
      %p197 = scmp.eq.s32.totalorder %s35, 0
      %p198 = por %p196, %p197
      %s199 = ssub.s32 %s29, %s36
      %p200 = scmp.eq.s32.totalorder %s199, 0
      %s202 = sadd.s32 %s201, 1
      %s203 = scalar_select %p200, %s201, %s202
      %p206 = pneg %p200
      %p207 = scmp.eq.s32.totalorder %s29, 2
      %p208 = por %p206, %p207
      %p209 = scmp.ne.s32.totalorder %s201, %s204
      %p210 = scmp.eq.s32.totalorder %s29, 0
      %p211 = por %p209, %p210
      %p212 = scmp.ne.s32.totalorder %s201, %s204
      %p213 = scmp.eq.s32.totalorder %s34, 2
      %p214 = por %p212, %p213
      %p215 = scmp.ne.s32.totalorder %s204, %s205
      %p216 = scmp.eq.s32.totalorder %s34, 0
      %p217 = por %p215, %p216
      %p218 = scmp.ne.s32.totalorder %s204, %s205
      %p219 = scmp.eq.s32.totalorder %s35, 2
      %p220 = por %p218, %p219
      %p222 = scmp.ne.s32.totalorder %s205, %s221
      %p223 = scmp.eq.s32.totalorder %s35, 0
      %p224 = por %p222, %p223
      %s226 = sadd.s32 %s225, 1
      %p229 = scmp.eq.s32.totalorder %s29, 2
      %p230 = scmp.ne.s32.totalorder %s225, %s227
      %p231 = scmp.eq.s32.totalorder %s29, 0
      %p232 = por %p230, %p231
      %p233 = scmp.ne.s32.totalorder %s225, %s227
      %p234 = scmp.eq.s32.totalorder %s34, 2
      %p235 = por %p233, %p234
      %p236 = scmp.ne.s32.totalorder %s227, %s228
      %p237 = scmp.eq.s32.totalorder %s34, 0
      %p238 = por %p236, %p237
      %p239 = scmp.ne.s32.totalorder %s227, %s228
      %p240 = scmp.eq.s32.totalorder %s35, 2
      %p241 = por %p239, %p240
      %p243 = scmp.ne.s32.totalorder %s228, %s242
      %p244 = scmp.eq.s32.totalorder %s35, 0
      %p245 = por %p243, %p244
      %s247 = sadd.s32 %s246, 1
      %p250 = scmp.eq.s32.totalorder %s29, 2
      %p251 = scmp.ne.s32.totalorder %s246, %s248
      %p252 = scmp.eq.s32.totalorder %s29, 0
      %p253 = por %p251, %p252
      %p254 = scmp.ne.s32.totalorder %s246, %s248
      %p255 = scmp.eq.s32.totalorder %s34, 2
      %p256 = por %p254, %p255
      %p257 = scmp.ne.s32.totalorder %s248, %s249
      %p258 = scmp.eq.s32.totalorder %s34, 0
      %p259 = por %p257, %p258
      %p260 = scmp.ne.s32.totalorder %s248, %s249
      %p261 = scmp.eq.s32.totalorder %s35, 2
      %p262 = por %p260, %p261
      %p264 = scmp.ne.s32.totalorder %s249, %s263
      %p265 = scmp.eq.s32.totalorder %s35, 0
      %p266 = por %p264, %p265
      %s268 = sadd.s32 %s267, 1
      %p271 = scmp.eq.s32.totalorder %s29, 2
      %p272 = scmp.ne.s32.totalorder %s267, %s269
      %p273 = scmp.eq.s32.totalorder %s29, 0
      %p274 = por %p272, %p273
      %p275 = scmp.ne.s32.totalorder %s267, %s269
      %p276 = scmp.eq.s32.totalorder %s34, 2
      %p277 = por %p275, %p276
      %p278 = scmp.ne.s32.totalorder %s269, %s270
      %p279 = scmp.eq.s32.totalorder %s34, 0
      %p280 = por %p278, %p279
      %p281 = scmp.ne.s32.totalorder %s269, %s270
      %p282 = scmp.eq.s32.totalorder %s35, 2
      %p283 = por %p281, %p282
      %p285 = scmp.ne.s32.totalorder %s270, %s284
      %p286 = scmp.eq.s32.totalorder %s35, 0
      %p287 = por %p285, %p286
      %s288 = ssub.s32 %s29, %s36
      %p289 = scmp.eq.s32.totalorder %s288, 0
      %s291 = sadd.s32 %s290, 1
      %s292 = scalar_select %p289, %s290, %s291
      %p295 = pneg %p289
      %p296 = scmp.eq.s32.totalorder %s29, 2
      %p297 = por %p295, %p296
      %p298 = scmp.ne.s32.totalorder %s290, %s293
      %p299 = scmp.eq.s32.totalorder %s29, 0
      %p300 = por %p298, %p299
      %p301 = scmp.ne.s32.totalorder %s290, %s293
      %p302 = scmp.eq.s32.totalorder %s34, 2
      %p303 = por %p301, %p302
      %p304 = scmp.ne.s32.totalorder %s293, %s294
      %p305 = scmp.eq.s32.totalorder %s34, 0
      %p306 = por %p304, %p305
      %p307 = scmp.ne.s32.totalorder %s293, %s294
      %p308 = scmp.eq.s32.totalorder %s35, 2
      %p309 = por %p307, %p308
      %p311 = scmp.ne.s32.totalorder %s294, %s310
      %p312 = scmp.eq.s32.totalorder %s35, 0
      %p313 = por %p311, %p312
      %s314 = ssub.s32 %s29, %s36
      %p315 = scmp.eq.s32.totalorder %s314, 0
      %s317 = sadd.s32 %s316, 1
      %s318 = scalar_select %p315, %s316, %s317
      %p321 = pneg %p315
      %p322 = scmp.eq.s32.totalorder %s29, 2
      %p323 = por %p321, %p322
      %p324 = scmp.ne.s32.totalorder %s316, %s319
      %p325 = scmp.eq.s32.totalorder %s29, 0
      %p326 = por %p324, %p325
      %p327 = scmp.ne.s32.totalorder %s316, %s319
      %p328 = scmp.eq.s32.totalorder %s34, 2
      %p329 = por %p327, %p328
      %p330 = scmp.ne.s32.totalorder %s319, %s320
      %p331 = scmp.eq.s32.totalorder %s34, 0
      %p332 = por %p330, %p331
      %p333 = scmp.ne.s32.totalorder %s319, %s320
      %p334 = scmp.eq.s32.totalorder %s35, 2
      %p335 = por %p333, %p334
      %p337 = scmp.ne.s32.totalorder %s320, %s336
      %p338 = scmp.eq.s32.totalorder %s35, 0
      %p339 = por %p337, %p338
      %s341 = sadd.s32 %s340, 1
      %p344 = scmp.eq.s32.totalorder %s29, 2
      %p345 = scmp.ne.s32.totalorder %s340, %s342
      %p346 = scmp.eq.s32.totalorder %s29, 0
      %p347 = por %p345, %p346
      %p348 = scmp.ne.s32.totalorder %s340, %s342
      %p349 = scmp.eq.s32.totalorder %s34, 2
      %p350 = por %p348, %p349
      %p351 = scmp.ne.s32.totalorder %s342, %s343
      %p352 = scmp.eq.s32.totalorder %s34, 0
      %p353 = por %p351, %p352
      %p354 = scmp.ne.s32.totalorder %s342, %s343
      %p355 = scmp.eq.s32.totalorder %s35, 2
      %p356 = por %p354, %p355
      %p358 = scmp.ne.s32.totalorder %s343, %s357
      %p359 = scmp.eq.s32.totalorder %s35, 0
      %p360 = por %p358, %p359
      %p361 = scmp.le.s32.totalorder 1, %s29
      %p362 = scmp.lt.s32.totalorder %s29, 4
      %p363 = pnand %p361, %p362
      %p364 = pneg %p363
      // Predicated region
      $region9: #{simclr_forward.1} parent=5 // pred_check
        _
      $region10: #{simclr_forward.1} parent=5 // pred_check_branch
        %366 = sbr.rel (%p363) target = $region12
      $region11: #{simclr_forward.1} parent=5 // pred_region
        %s367 = ssub.s32 %s29, 1
        // Predicated region
        $region13: #{simclr_forward.1} parent=11 // pred_check
          %p368 = pneg %p50
        $region14: #{simclr_forward.1} parent=11 // pred_check_branch
          %370 = sbr.rel (%p368) target = $region16
        $region15: #{simclr_forward.1} parent=11 // pred_region
          %s372 = ssub.s32 64, 64
          %373 = vsyncadd [#allocation7], %s372
          %s375 = sshll.u32 %s0, 4
          %s376 = int_to_ptr.vmem [resolvable:$true] %s375
          %378 = dma.vmem_to_smem %s376, 64, [#allocation4], [#allocation7]
        $region16: #{simclr_forward.1} parent=11 // pred_fallthru
          _
        // Predicated region
        $region17: #{simclr_forward.1} parent=11 // pred_check
          %p379 = pneg %p71
        $region18: #{simclr_forward.1} parent=11 // pred_check_branch
          %381 = sbr.rel (%p379) target = $region20
        $region19: #{simclr_forward.1} parent=11 // pred_region
          %s383 = ssub.s32 1024, 1024
          %384 = vsyncadd [#allocation5], %s383
          %s385 = sshll.u32 [#allocation8], 4
          %s386 = int_to_ptr.vmem [resolvable:$true] %s385
          %391 = dma.hbm_to_vmem [thread:$0]  %s1, 1024, %s386, [#allocation5], 64, 64, 4
        $region20: #{simclr_forward.1} parent=11 // pred_fallthru
          _
        // Predicated region
        $region21: #{simclr_forward.1} parent=11 // pred_check
          %p392 = pneg %p92
        $region22: #{simclr_forward.1} parent=11 // pred_check_branch
          %394 = sbr.rel (%p392) target = $region24
        $region23: #{simclr_forward.1} parent=11 // pred_region
          %s396 = ssub.s32 2048, 2048
          %397 = vsyncadd [#allocation10], %s396
          %s398 = sshll.u32 [#allocation9], 4
          %s399 = int_to_ptr.vmem [resolvable:$true] %s398
          %404 = dma.hbm_to_vmem [thread:$0]  %s2, 2048, %s399, [#allocation10], 128, 128, 8
        $region24: #{simclr_forward.1} parent=11 // pred_fallthru
          _
        // Predicated region
        $region25: #{simclr_forward.1} parent=11 // pred_check
          %p405 = pneg %p191
        $region26: #{simclr_forward.1} parent=11 // pred_check_branch
          %407 = sbr.rel (%p405) target = $region28
        $region27: #{simclr_forward.1} parent=11 // pred_region
          _
        $region28: #{simclr_forward.1} parent=11 // pred_fallthru
          _
        // Predicated region
        $region29: #{simclr_forward.1} parent=11 // pred_check
          %p408 = pneg %p238
        $region30: #{simclr_forward.1} parent=11 // pred_check_branch
          %410 = sbr.rel (%p408) target = $region32
        $region31: #{simclr_forward.1} parent=11 // pred_region
          %s412 = ssub.s32 9216, 9216
          %413 = vsyncadd [#allocation10], %s412
          %s414 = sshll.u32 [#allocation15], 4
          %s415 = int_to_ptr.vmem [resolvable:$true] %s414
          %420 = dma.hbm_to_vmem [thread:$0]  %s8, 9216, %s415, [#allocation10], 192, 192, 12
        $region32: #{simclr_forward.1} parent=11 // pred_fallthru
          _
        // Predicated region
        $region33: #{simclr_forward.1} parent=11 // pred_check
          %p421 = pneg %p259
        $region34: #{simclr_forward.1} parent=11 // pred_check_branch
          %423 = sbr.rel (%p421) target = $region36
        $region35: #{simclr_forward.1} parent=11 // pred_region
          _
        $region36: #{simclr_forward.1} parent=11 // pred_fallthru
          _
        // Predicated region
        $region37: #{simclr_forward.1} parent=11 // pred_check
          %p424 = pneg %p280
        $region38: #{simclr_forward.1} parent=11 // pred_check_branch
          %426 = sbr.rel (%p424) target = $region40
        $region39: #{simclr_forward.1} parent=11 // pred_region
          _
        $region40: #{simclr_forward.1} parent=11 // pred_fallthru
          _
      $region12: #{simclr_forward.1} parent=5 // pred_fallthru
        _
      %p427 = scmp.lt.s32.totalorder %s29, 3
      // Predicated region
      $region41: #{simclr_forward.1} parent=5 // pred_check
        %p428 = pneg %p427
      $region42: #{simclr_forward.1} parent=5 // pred_check_branch
        %430 = sbr.rel (%p428) target = $region44
      $region43: #{simclr_forward.1} parent=5 // pred_region
        // Predicated region
        $region45: #{simclr_forward.1} parent=43 // pred_check
          %p431 = pneg %p112
        $region46: #{simclr_forward.1} parent=43 // pred_check_branch
          %433 = sbr.rel (%p431) target = $region48
        $region47: #{simclr_forward.1} parent=43 // pred_region
          %s434 = sand.u32 %s29, 1
          %s435 = scalar_lea.sflag [#allocation5], %s434
          %s436 = sand.u32 %s102, 1
          %s437 = smul.addr %s436, 64
          %s438 = scalar_lea.vmem [#allocation11], %s437
          %s440 = ssub.s32 1024, 1024
          %441 = vsyncadd %s435, %s440
          %s442 = smul.addr %s29, 16
          %s443 = smul.addr %s442, 64
          %s444 = scalar_lea.hbm %s3, %s443
          %s445 = sshll.u32 %s438, 4
          %s446 = int_to_ptr.vmem [resolvable:$true] %s445
          %451 = dma.hbm_to_vmem [thread:$0]  %s444, 1024, %s446, %s435, 64, 64, 4
        $region48: #{simclr_forward.1} parent=43 // pred_fallthru
          _
        // Predicated region
        $region49: #{simclr_forward.1} parent=43 // pred_check
          %p452 = pneg %p138
        $region50: #{simclr_forward.1} parent=43 // pred_check_branch
          %454 = sbr.rel (%p452) target = $region52
        $region51: #{simclr_forward.1} parent=43 // pred_region
          %s455 = sand.u32 %s29, 1
          %s456 = scalar_lea.sflag [#allocation5], %s455
          %s457 = sand.u32 %s128, 1
          %s458 = smul.addr %s457, 64
          %s459 = scalar_lea.vmem [#allocation12], %s458
          %s461 = ssub.s32 1024, 1024
          %462 = vsyncadd %s456, %s461
          %s463 = smul.addr %s29, 16
          %s464 = smul.addr %s463, 64
          %s465 = scalar_lea.hbm %s4, %s464
          %s466 = sshll.u32 %s459, 4
          %s467 = int_to_ptr.vmem [resolvable:$true] %s466
          %472 = dma.hbm_to_vmem [thread:$0]  %s465, 1024, %s467, %s456, 64, 64, 4
        $region52: #{simclr_forward.1} parent=43 // pred_fallthru
          _
        // Predicated region
        $region53: #{simclr_forward.1} parent=43 // pred_check
          %p473 = pneg %p164
        $region54: #{simclr_forward.1} parent=43 // pred_check_branch
          %475 = sbr.rel (%p473) target = $region56
        $region55: #{simclr_forward.1} parent=43 // pred_region
          %s476 = sand.u32 %s29, 1
          %s477 = scalar_lea.sflag [#allocation5], %s476
          %s478 = sand.u32 %s154, 1
          %s479 = smul.addr %s478, 8
          %s480 = scalar_lea.vmem [#allocation13], %s479
          %s482 = ssub.s32 128, 128
          %483 = vsyncadd %s477, %s482
          %s484 = smul.addr %s29, 128
          %s485 = scalar_lea.hbm %s5, %s484
          %s487 = sshll.u32 %s480, 4
          %s488 = int_to_ptr.vmem [resolvable:$true] %s487
          %490 = dma.hbm_to_vmem [thread:$0]  %s485, 128, %s488, %s477
        $region56: #{simclr_forward.1} parent=43 // pred_fallthru
          _
        // Predicated region
        $region57: #{simclr_forward.1} parent=43 // pred_check
          %p491 = pneg %p211
        $region58: #{simclr_forward.1} parent=43 // pred_check_branch
          %493 = sbr.rel (%p491) target = $region60
        $region59: #{simclr_forward.1} parent=43 // pred_region
          %s494 = sand.u32 %s29, 1
          %s495 = scalar_lea.sflag [#allocation5], %s494
          %s496 = sand.u32 %s201, 1
          %s497 = smul.addr %s496, 192
          %s498 = scalar_lea.vmem [#allocation14], %s497
          %s500 = ssub.s32 3072, 3072
          %501 = vsyncadd %s495, %s500
          %s502 = smul.addr %s29, 48
          %s503 = smul.addr %s502, 64
          %s504 = scalar_lea.hbm %s7, %s503
          %s505 = sshll.u32 %s498, 4
          %s506 = int_to_ptr.vmem [resolvable:$true] %s505
          %511 = dma.hbm_to_vmem [thread:$0]  %s504, 3072, %s506, %s495, 192, 192, 12
        $region60: #{simclr_forward.1} parent=43 // pred_fallthru
          _
      $region44: #{simclr_forward.1} parent=5 // pred_fallthru
        _
      %p512 = scmp.le.s32.totalorder 1, %s29
      %p513 = scmp.lt.s32.totalorder %s29, 4
      %p514 = pnand %p512, %p513
      %p515 = pneg %p514
      // Predicated region
      $region61: #{simclr_forward.1} parent=5 // pred_check
        _
      $region62: #{simclr_forward.1} parent=5 // pred_check_branch
        %517 = sbr.rel (%p514) target = $region64
      $region63: #{simclr_forward.1} parent=5 // pred_region
        %s518 = ssub.s32 %s29, 1
        // Predicated region
        $region65: #{simclr_forward.1} parent=63 // pred_check
          %p519 = pneg %p50
        $region66: #{simclr_forward.1} parent=63 // pred_check_branch
          %521 = sbr.rel (%p519) target = $region68
        $region67: #{simclr_forward.1} parent=63 // pred_region
          %522 = dma.done [#allocation7], 64
        $region68: #{simclr_forward.1} parent=63 // pred_fallthru
          _
        // Predicated region
        $region69: #{simclr_forward.1} parent=63 // pred_check
          %p523 = pneg %p71
        $region70: #{simclr_forward.1} parent=63 // pred_check_branch
          %525 = sbr.rel (%p523) target = $region72
        $region71: #{simclr_forward.1} parent=63 // pred_region
          %526 = dma.done [#allocation5], 1024
        $region72: #{simclr_forward.1} parent=63 // pred_fallthru
          _
        // Predicated region
        $region73: #{simclr_forward.1} parent=63 // pred_check
          %p527 = pneg %p92
        $region74: #{simclr_forward.1} parent=63 // pred_check_branch
          %529 = sbr.rel (%p527) target = $region76
        $region75: #{simclr_forward.1} parent=63 // pred_region
          %530 = dma.done [#allocation10], 2048
        $region76: #{simclr_forward.1} parent=63 // pred_fallthru
          _
        %s531 = sand.u32 %s34, 1
        %s532 = scalar_lea.sflag [#allocation5], %s531
        %s533 = sand.u32 %s105, 1
        %s534 = smul.addr %s533, 64
        %s535 = scalar_lea.vmem [#allocation11], %s534
        // Predicated region
        $region77: #{simclr_forward.1} parent=63 // pred_check
          %p536 = pneg %p118
        $region78: #{simclr_forward.1} parent=63 // pred_check_branch
          %538 = sbr.rel (%p536) target = $region80
        $region79: #{simclr_forward.1} parent=63 // pred_region
          %539 = dma.done %s532, 1024
        $region80: #{simclr_forward.1} parent=63 // pred_fallthru
          _
        %s540 = sand.u32 %s34, 1
        %s541 = scalar_lea.sflag [#allocation5], %s540
        %s542 = sand.u32 %s131, 1
        %s543 = smul.addr %s542, 64
        %s544 = scalar_lea.vmem [#allocation12], %s543
        // Predicated region
        $region81: #{simclr_forward.1} parent=63 // pred_check
          %p545 = pneg %p144
        $region82: #{simclr_forward.1} parent=63 // pred_check_branch
          %547 = sbr.rel (%p545) target = $region84
        $region83: #{simclr_forward.1} parent=63 // pred_region
          %548 = dma.done %s541, 1024
        $region84: #{simclr_forward.1} parent=63 // pred_fallthru
          _
        %s549 = sand.u32 %s34, 1
        %s550 = scalar_lea.sflag [#allocation5], %s549
        %s551 = sand.u32 %s157, 1
        %s552 = smul.addr %s551, 8
        %s553 = scalar_lea.vmem [#allocation13], %s552
        // Predicated region
        $region85: #{simclr_forward.1} parent=63 // pred_check
          %p554 = pneg %p170
        $region86: #{simclr_forward.1} parent=63 // pred_check_branch
          %556 = sbr.rel (%p554) target = $region88
        $region87: #{simclr_forward.1} parent=63 // pred_region
          %557 = dma.done %s550, 128
        $region88: #{simclr_forward.1} parent=63 // pred_fallthru
          _
        %s558 = sand.u32 %s34, 1
        %s559 = scalar_lea.sflag [#allocation5], %s558
        %s560 = sand.u32 %s204, 1
        %s561 = smul.addr %s560, 192
        %s562 = scalar_lea.vmem [#allocation14], %s561
        // Predicated region
        $region89: #{simclr_forward.1} parent=63 // pred_check
          %p563 = pneg %p217
        $region90: #{simclr_forward.1} parent=63 // pred_check_branch
          %565 = sbr.rel (%p563) target = $region92
        $region91: #{simclr_forward.1} parent=63 // pred_region
          %566 = dma.done %s559, 3072
        $region92: #{simclr_forward.1} parent=63 // pred_fallthru
          _
        // Predicated region
        $region93: #{simclr_forward.1} parent=63 // pred_check
          %p567 = pneg %p238
        $region94: #{simclr_forward.1} parent=63 // pred_check_branch
          %569 = sbr.rel (%p567) target = $region96
        $region95: #{simclr_forward.1} parent=63 // pred_region
          %570 = dma.done [#allocation10], 9216
        $region96: #{simclr_forward.1} parent=63 // pred_fallthru
          _
        %571 = sfence
        %p572 = pneg %p50
        %p573 = pneg %p47
        %p574 = pneg %p71
        %p575 = pneg %p68
        %p576 = pneg %p92
        %p577 = pneg %p89
        %s578 = sand.u32 %s34, 1
        %s579 = scalar_lea.sflag [#allocation5], %s578
        %s580 = sand.u32 %s105, 1
        %s581 = smul.addr %s580, 64
        %s582 = scalar_lea.vmem [#allocation11], %s581
        %p583 = pneg %p118
        %p584 = pneg %p115
        %s585 = sand.u32 %s34, 1
        %s586 = scalar_lea.sflag [#allocation5], %s585
        %s587 = sand.u32 %s131, 1
        %s588 = smul.addr %s587, 64
        %s589 = scalar_lea.vmem [#allocation12], %s588
        %p590 = pneg %p144
        %p591 = pneg %p141
        %s592 = sand.u32 %s34, 1
        %s593 = scalar_lea.sflag [#allocation5], %s592
        %s594 = sand.u32 %s157, 1
        %s595 = smul.addr %s594, 8
        %s596 = scalar_lea.vmem [#allocation13], %s595
        %p597 = pneg %p170
        %p598 = pneg %p167
        %p599 = pneg %p191
        %p600 = pneg %p188
        %s601 = sand.u32 %s34, 1
        %s602 = scalar_lea.sflag [#allocation5], %s601
        %s603 = sand.u32 %s204, 1
        %s604 = smul.addr %s603, 192
        %s605 = scalar_lea.vmem [#allocation14], %s604
        %p606 = pneg %p217
        %p607 = pneg %p214
        %p608 = pneg %p238
        %p609 = pneg %p235
        %p610 = pneg %p259
        %p611 = pneg %p256
        %p612 = pneg %p280
        %p613 = pneg %p277
        %p614 = pneg %p306
        %p615 = pneg %p303
        %s616 = sand.u32 %s293, 1
        %s617 = scalar_lea.sflag [#allocation6], %s616
        %s618 = sand.u32 %s293, 1
        %s619 = smul.addr %s618, 128
        %s620 = scalar_lea.vmem [#allocation16], %s619
        %p621 = pneg %p332
        %p622 = pneg %p329
        %s623 = sand.u32 %s34, 1
        %s624 = scalar_lea.sflag [#allocation18], %s623
        %s625 = sand.u32 %s319, 1
        %s626 = smul.addr %s625, 8
        %s627 = scalar_lea.vmem [#allocation17], %s626
        %p628 = pneg %p353
        %p629 = pneg %p350
        %p631 = scmp.eq.s32.totalorder %s34, 0
        // Predicated region
        $region97: #{simclr_forward.1} parent=63 // pred_check
          %p632 = pneg %p631
        $region98: #{simclr_forward.1} parent=63 // pred_check_branch
          %634 = sbr.rel (%p632) target = $region100
        $region99: #{simclr_forward.1} parent=63 // pred_region
          %v635 = vld [vmem:[#allocation9] sm:$0xff]
          %v636 = vld [vmem:[#allocation9 + $0x8] sm:$0xff]
          %v637 = vld [vmem:[#allocation9 + $0x10] sm:$0xff]
          %v638 = vld [vmem:[#allocation9 + $0x18] sm:$0xff]
          %v639 = vld [vmem:[#allocation9 + $0x20] sm:$0xff]
          %v640 = vld [vmem:[#allocation9 + $0x28] sm:$0xff]
          %v641 = vld [vmem:[#allocation9 + $0x30] sm:$0xff]
          %v642 = vld [vmem:[#allocation9 + $0x38] sm:$0xff]
          %v643 = vld [vmem:[#allocation9 + $0x40] sm:$0xff]
          %v644 = vld [vmem:[#allocation9 + $0x48] sm:$0xff]
          %v645 = vld [vmem:[#allocation9 + $0x50] sm:$0xff]
          %v646 = vld [vmem:[#allocation9 + $0x58] sm:$0xff]
          %v647 = vld [vmem:[#allocation9 + $0x60] sm:$0xff]
          %v648 = vld [vmem:[#allocation9 + $0x68] sm:$0xff]
          %v649 = vld [vmem:[#allocation9 + $0x70] sm:$0xff]
          %v650 = vld [vmem:[#allocation9 + $0x78] sm:$0xff]
          %651 = vst [vmem:[#allocation2] sm:$0xff] %v635
          %652 = vst [vmem:[#allocation2 + $0x8] sm:$0xff] %v636
          %653 = vst [vmem:[#allocation2 + $0x10] sm:$0xff] %v637
          %654 = vst [vmem:[#allocation2 + $0x18] sm:$0xff] %v638
          %655 = vst [vmem:[#allocation2 + $0x20] sm:$0xff] %v639
          %656 = vst [vmem:[#allocation2 + $0x28] sm:$0xff] %v640
          %657 = vst [vmem:[#allocation2 + $0x30] sm:$0xff] %v641
          %658 = vst [vmem:[#allocation2 + $0x38] sm:$0xff] %v642
          %659 = vst [vmem:[#allocation2 + $0x40] sm:$0xff] %v643
          %660 = vst [vmem:[#allocation2 + $0x48] sm:$0xff] %v644
          %661 = vst [vmem:[#allocation2 + $0x50] sm:$0xff] %v645
          %662 = vst [vmem:[#allocation2 + $0x58] sm:$0xff] %v646
          %663 = vst [vmem:[#allocation2 + $0x60] sm:$0xff] %v647
          %664 = vst [vmem:[#allocation2 + $0x68] sm:$0xff] %v648
          %665 = vst [vmem:[#allocation2 + $0x70] sm:$0xff] %v649
          %666 = vst [vmem:[#allocation2 + $0x78] sm:$0xff] %v650
          %667 = vst [vmem:[#allocation3] sm:$0xff] 0.0
          %668 = vst [vmem:[#allocation3 + $0x8] sm:$0xff] 0.0
          %669 = vst [vmem:[#allocation3 + $0x10] sm:$0xff] 0.0
        $region100: #{simclr_forward.1} parent=63 // pred_fallthru
          _
        %v670 = vld [vmem:[#allocation2] sm:$0xff]
        %v671 = vld [vmem:[#allocation2 + $0x8] sm:$0xff]
        %v672 = vld [vmem:[#allocation2 + $0x10] sm:$0xff]
        %v673 = vld [vmem:[#allocation2 + $0x18] sm:$0xff]
        %v674 = vld [vmem:[#allocation2 + $0x20] sm:$0xff]
        %v675 = vld [vmem:[#allocation2 + $0x28] sm:$0xff]
        %v676 = vld [vmem:[#allocation2 + $0x30] sm:$0xff]
        %v677 = vld [vmem:[#allocation2 + $0x38] sm:$0xff]
        %v678 = vld [vmem:[#allocation2 + $0x40] sm:$0xff]
        %v679 = vld [vmem:[#allocation2 + $0x48] sm:$0xff]
        %v680 = vld [vmem:[#allocation2 + $0x50] sm:$0xff]
        %v681 = vld [vmem:[#allocation2 + $0x58] sm:$0xff]
        %v682 = vld [vmem:[#allocation2 + $0x60] sm:$0xff]
        %v683 = vld [vmem:[#allocation2 + $0x68] sm:$0xff]
        %v684 = vld [vmem:[#allocation2 + $0x70] sm:$0xff]
        %v685 = vld [vmem:[#allocation2 + $0x78] sm:$0xff]
        %s686 = smul.u32 %s34, 128
        %s687 = sld [smem:[#allocation4 + %s686]]
        %v688 = vld [vmem:[#allocation8] sm:$0xf]
        %v689 = vld [vmem:[#allocation8 + $0x4] sm:$0xf]
        %v690 = vld [vmem:[#allocation8 + $0x8] sm:$0xf]
        %v691 = vld [vmem:[#allocation8 + $0xc] sm:$0xf]
        %v692 = vld [vmem:[#allocation8 + $0x10] sm:$0xf]
        %v693 = vld [vmem:[#allocation8 + $0x14] sm:$0xf]
        %v694 = vld [vmem:[#allocation8 + $0x18] sm:$0xf]
        %v695 = vld [vmem:[#allocation8 + $0x1c] sm:$0xf]
        %v696 = vld [vmem:[#allocation8 + $0x20] sm:$0xf]
        %v697 = vld [vmem:[#allocation8 + $0x24] sm:$0xf]
        %v698 = vld [vmem:[#allocation8 + $0x28] sm:$0xf]
        %v699 = vld [vmem:[#allocation8 + $0x2c] sm:$0xf]
        %v700 = vld [vmem:[#allocation8 + $0x30] sm:$0xf]
        %v701 = vld [vmem:[#allocation8 + $0x34] sm:$0xf]
        %v702 = vld [vmem:[#allocation8 + $0x38] sm:$0xf]
        %v703 = vld [vmem:[#allocation8 + $0x3c] sm:$0xf]
        %v704 = vpack.c.bf16 %v671, %v670
        %v705 = vpack.c.bf16 %v673, %v672
        %v706 = vpack.c.bf16 %v675, %v674
        %v707 = vpack.c.bf16 %v677, %v676
        %v708 = vpack.c.bf16 %v679, %v678
        %v709 = vpack.c.bf16 %v681, %v680
        %v710 = vpack.c.bf16 %v683, %v682
        %v711 = vpack.c.bf16 %v685, %v684
        %s712 = sadd.f32 %s687, 1.0
        %v713 = vstv %s712
        %v714 = vmul.f32 %v713, %v670
        %v715 = vmul.f32 %v713, %v671
        %v716 = vmul.f32 %v713, %v672
        %v717 = vmul.f32 %v713, %v673
        %v718 = vmul.f32 %v713, %v674
        %v719 = vmul.f32 %v713, %v675
        %v720 = vmul.f32 %v713, %v676
        %v721 = vmul.f32 %v713, %v677
        %v722 = vmul.f32 %v713, %v678
        %v723 = vmul.f32 %v713, %v679
        %v724 = vmul.f32 %v713, %v680
        %v725 = vmul.f32 %v713, %v681
        %v726 = vmul.f32 %v713, %v682
        %v727 = vmul.f32 %v713, %v683
        %v728 = vmul.f32 %v713, %v684
        %v729 = vmul.f32 %v713, %v685
        %v746 = vunpack.c.l.b16 %v688
        %v747 = vunpack.c.l.b16 %v689
        %v748 = vunpack.c.l.b16 %v690
        %v749 = vunpack.c.l.b16 %v691
        %v750 = vunpack.c.l.b16 %v692
        %v751 = vunpack.c.l.b16 %v693
        %v752 = vunpack.c.l.b16 %v694
        %v753 = vunpack.c.l.b16 %v695
        %v754 = vunpack.c.l.b16 %v696
        %v755 = vunpack.c.l.b16 %v697
        %v756 = vunpack.c.l.b16 %v698
        %v757 = vunpack.c.l.b16 %v699
        %v758 = vunpack.c.l.b16 %v700
        %v759 = vunpack.c.l.b16 %v701
        %v760 = vunpack.c.l.b16 %v702
        %v761 = vunpack.c.l.b16 %v703
        %v762 = vpack.c.b16 %v747, %v746
        %v763 = vpack.c.b16 %v749, %v748
        %v764 = vpack.c.b16 %v751, %v750
        %v765 = vpack.c.b16 %v753, %v752
        %v766 = vpack.c.b16 %v755, %v754
        %v767 = vpack.c.b16 %v757, %v756
        %v768 = vpack.c.b16 %v759, %v758
        %v769 = vpack.c.b16 %v761, %v760
        %778 = vmatprep.subr.bf16.mxu0 0
        %779 = vmatpush1.bf16.msra.mxu0 %v704
        %780 = vmatprep.subr.bf16.mxu0 0
        %781 = vmatpush1.bf16.msra.mxu0 %v705
        %782 = vmatprep.subr.bf16.mxu0 0
        %783 = vmatpush1.bf16.msra.mxu0 %v706
        %784 = vmatprep.subr.bf16.mxu0 0
        %785 = vmatpush1.bf16.msra.mxu0 %v707
        %786 = vmatprep.subr.bf16.mxu0 0
        %787 = vmatpush1.bf16.msra.mxu0 %v708
        %788 = vmatprep.subr.bf16.mxu0 0
        %789 = vmatpush1.bf16.msra.mxu0 %v709
        %790 = vmatprep.subr.bf16.mxu0 0
        %791 = vmatpush1.bf16.msra.mxu0 %v710
        %792 = vmatprep.subr.bf16.mxu0 0
        %793 = vmatpush1.bf16.msra.mxu0 %v711
        %794 = vmatprep.subr.bf16.mxu0 0
        %795 = vmatpush1.bf16.msra.mxu0 0
        %796 = vmatprep.subr.bf16.mxu0 0
        %797 = vmatpush1.bf16.msra.mxu0 0
        %798 = vmatprep.subr.bf16.mxu0 0
        %799 = vmatpush1.bf16.msra.mxu0 0
        %800 = vmatprep.subr.bf16.mxu0 0
        %801 = vmatpush1.bf16.msra.mxu0 0
        %802 = vmatprep.subr.bf16.mxu0 0
        %803 = vmatpush1.bf16.msra.mxu0 0
        %804 = vmatprep.subr.bf16.mxu0 0
        %805 = vmatpush1.bf16.msra.mxu0 0
        %806 = vmatprep.subr.bf16.mxu0 0
        %807 = vmatpush1.bf16.msra.mxu0 0
        %808 = vmatprep.subr.bf16.mxu0 0
        %809 = vmatpush1.bf16.msra.mxu0 0
        %810 = vmatprep.mubr.bf16.mxu0 0
        %811 = vmatmul.mubr.bf16.gmra.mrb[0].mxu0 %v762
        %v812 = vpop.f32.mrb[0].mxu0
        %v813 = vadd.f32 %v714, %v812
        %v814 = vpop.f32.mrb[0].mxu0
        %v815 = vpop.f32.mrb[0].mxu0
        %v816 = vadd.f32 %v715, %v815
        %v817 = vpop.f32.mrb[0].mxu0
        %818 = vmatprep.mubr.bf16.mxu0 0
        %819 = vmatmul.mubr.bf16.gmra.mrb[0].mxu0 %v763
        %v820 = vpop.f32.mrb[0].mxu0
        %v821 = vadd.f32 %v716, %v820
        %v822 = vpop.f32.mrb[0].mxu0
        %v823 = vpop.f32.mrb[0].mxu0
        %v824 = vadd.f32 %v717, %v823
        %v825 = vpop.f32.mrb[0].mxu0
        %826 = vmatprep.mubr.bf16.mxu0 0
        %827 = vmatmul.mubr.bf16.gmra.mrb[0].mxu0 %v764
        %v828 = vpop.f32.mrb[0].mxu0
        %v829 = vadd.f32 %v718, %v828
        %v830 = vpop.f32.mrb[0].mxu0
        %v831 = vpop.f32.mrb[0].mxu0
        %v832 = vadd.f32 %v719, %v831
        %v833 = vpop.f32.mrb[0].mxu0
        %834 = vmatprep.mubr.bf16.mxu0 0
        %835 = vmatmul.mubr.bf16.gmra.mrb[0].mxu0 %v765
        %v836 = vpop.f32.mrb[0].mxu0
        %v837 = vadd.f32 %v720, %v836
        %v838 = vpop.f32.mrb[0].mxu0
        %v839 = vpop.f32.mrb[0].mxu0
        %v840 = vadd.f32 %v721, %v839
        %v841 = vpop.f32.mrb[0].mxu0
        %842 = vmatprep.mubr.bf16.mxu0 0
        %843 = vmatmul.mubr.bf16.gmra.mrb[0].mxu0 %v766
        %v844 = vpop.f32.mrb[0].mxu0
        %v845 = vadd.f32 %v722, %v844
        %v846 = vpop.f32.mrb[0].mxu0
        %v847 = vpop.f32.mrb[0].mxu0
        %v848 = vadd.f32 %v723, %v847
        %v849 = vpop.f32.mrb[0].mxu0
        %850 = vmatprep.mubr.bf16.mxu0 0
        %851 = vmatmul.mubr.bf16.gmra.mrb[0].mxu0 %v767
        %v852 = vpop.f32.mrb[0].mxu0
        %v853 = vadd.f32 %v724, %v852
        %v854 = vpop.f32.mrb[0].mxu0
        %v855 = vpop.f32.mrb[0].mxu0
        %v856 = vadd.f32 %v725, %v855
        %v857 = vpop.f32.mrb[0].mxu0
        %858 = vmatprep.mubr.bf16.mxu0 0
        %859 = vmatmul.mubr.bf16.gmra.mrb[0].mxu0 %v768
        %v860 = vpop.f32.mrb[0].mxu0
        %v861 = vadd.f32 %v726, %v860
        %v862 = vpop.f32.mrb[0].mxu0
        %v863 = vpop.f32.mrb[0].mxu0
        %v864 = vadd.f32 %v727, %v863
        %v865 = vpop.f32.mrb[0].mxu0
        %866 = vmatprep.mubr.bf16.mxu0 0
        %867 = vmatmul.mubr.bf16.gmra.mrb[0].mxu0 %v769
        %v868 = vpop.f32.mrb[0].mxu0
        %v869 = vadd.f32 %v728, %v868
        %v870 = vpop.f32.mrb[0].mxu0
        %v871 = vpop.f32.mrb[0].mxu0
        %v872 = vadd.f32 %v729, %v871
        %v873 = vpop.f32.mrb[0].mxu0
        %874 = vdwg.mxu0
        %v875 = vld [vmem:[%s553] sm:$0xff]
        %v876 = vpack.c.bf16 %v816, %v813
        %v877 = vpack.c.bf16 %v824, %v821
        %v878 = vpack.c.bf16 %v832, %v829
        %v879 = vpack.c.bf16 %v840, %v837
        %v880 = vpack.c.bf16 %v848, %v845
        %v881 = vpack.c.bf16 %v856, %v853
        %v882 = vpack.c.bf16 %v864, %v861
        %v883 = vpack.c.bf16 %v872, %v869
        %v884 = vld [vmem:[%s535] sm:$0xf]
        %v885 = vld [vmem:[%s535 + $0x4] sm:$0xf]
        %v886 = vld [vmem:[%s535 + $0x8] sm:$0xf]
        %v887 = vld [vmem:[%s535 + $0xc] sm:$0xf]
        %v888 = vld [vmem:[%s535 + $0x10] sm:$0xf]
        %v889 = vld [vmem:[%s535 + $0x14] sm:$0xf]
        %v890 = vld [vmem:[%s535 + $0x18] sm:$0xf]
        %v891 = vld [vmem:[%s535 + $0x1c] sm:$0xf]
        %v892 = vld [vmem:[%s535 + $0x20] sm:$0xf]
        %v893 = vld [vmem:[%s535 + $0x24] sm:$0xf]
        %v894 = vld [vmem:[%s535 + $0x28] sm:$0xf]
        %v895 = vld [vmem:[%s535 + $0x2c] sm:$0xf]
        %v896 = vld [vmem:[%s535 + $0x30] sm:$0xf]
        %v897 = vld [vmem:[%s535 + $0x34] sm:$0xf]
        %v898 = vld [vmem:[%s535 + $0x38] sm:$0xf]
        %v899 = vld [vmem:[%s535 + $0x3c] sm:$0xf]
        %v900 = vlaneseq
        %v901 = vshrl.u32 %v900, 7
        %v902 = vsub.s32 0, %v901
        %v903 = vrot.slane %v875, %v902
        %v920 = vunpack.c.l.b16 %v884
        %v921 = vunpack.c.l.b16 %v885
        %v922 = vunpack.c.l.b16 %v886
        %v923 = vunpack.c.l.b16 %v887
        %v924 = vunpack.c.l.b16 %v888
        %v925 = vunpack.c.l.b16 %v889
        %v926 = vunpack.c.l.b16 %v890
        %v927 = vunpack.c.l.b16 %v891
        %v928 = vunpack.c.l.b16 %v892
        %v929 = vunpack.c.l.b16 %v893
        %v930 = vunpack.c.l.b16 %v894
        %v931 = vunpack.c.l.b16 %v895
        %v932 = vunpack.c.l.b16 %v896
        %v933 = vunpack.c.l.b16 %v897
        %v934 = vunpack.c.l.b16 %v898
        %v935 = vunpack.c.l.b16 %v899
        %v936 = vpack.c.b16 %v921, %v920
        %v937 = vpack.c.b16 %v923, %v922
        %v938 = vpack.c.b16 %v925, %v924
        %v939 = vpack.c.b16 %v927, %v926
        %v940 = vpack.c.b16 %v929, %v928
        %v941 = vpack.c.b16 %v931, %v930
        %v942 = vpack.c.b16 %v933, %v932
        %v943 = vpack.c.b16 %v935, %v934
        %952 = vmatprep.subr.bf16.mxu0 0
        %953 = vmatpush1.bf16.msra.mxu0 %v936
        %954 = vmatprep.subr.bf16.mxu0 0
        %955 = vmatpush1.bf16.msra.mxu0 %v937
        %956 = vmatprep.subr.bf16.mxu0 0
        %957 = vmatpush1.bf16.msra.mxu0 %v938
        %958 = vmatprep.subr.bf16.mxu0 0
        %959 = vmatpush1.bf16.msra.mxu0 %v939
        %960 = vmatprep.subr.bf16.mxu0 0
        %961 = vmatpush1.bf16.msra.mxu0 %v940
        %962 = vmatprep.subr.bf16.mxu0 0
        %963 = vmatpush1.bf16.msra.mxu0 %v941
        %964 = vmatprep.subr.bf16.mxu0 0
        %965 = vmatpush1.bf16.msra.mxu0 %v942
        %966 = vmatprep.subr.bf16.mxu0 0
        %967 = vmatpush1.bf16.msra.mxu0 %v943
        %968 = vmatprep.subr.bf16.mxu0 0
        %969 = vmatpush1.bf16.msra.mxu0 0
        %970 = vmatprep.subr.bf16.mxu0 0
        %971 = vmatpush1.bf16.msra.mxu0 0
        %972 = vmatprep.subr.bf16.mxu0 0
        %973 = vmatpush1.bf16.msra.mxu0 0
        %974 = vmatprep.subr.bf16.mxu0 0
        %975 = vmatpush1.bf16.msra.mxu0 0
        %976 = vmatprep.subr.bf16.mxu0 0
        %977 = vmatpush1.bf16.msra.mxu0 0
        %978 = vmatprep.subr.bf16.mxu0 0
        %979 = vmatpush1.bf16.msra.mxu0 0
        %980 = vmatprep.subr.bf16.mxu0 0
        %981 = vmatpush1.bf16.msra.mxu0 0
        %982 = vmatprep.subr.bf16.mxu0 0
        %983 = vmatpush1.bf16.msra.mxu0 0
        %984 = vmatprep.mubr.bf16.mxu0 0
        %985 = vmatmul.mubr.bf16.gmra.mrb[0].mxu0 %v876
        %v986 = vpop.f32.mrb[0].mxu0
        %v987 = vadd.f32 %v903, %v986
        %v988 = vpop.f32.mrb[0].mxu0
        %v989 = vpop.f32.mrb[0].mxu0
        %v990 = vadd.f32 %v903, %v989
        %v991 = vpop.f32.mrb[0].mxu0
        %992 = vmatprep.mubr.bf16.mxu0 0
        %993 = vmatmul.mubr.bf16.gmra.mrb[0].mxu0 %v877
        %v994 = vpop.f32.mrb[0].mxu0
        %v995 = vadd.f32 %v903, %v994
        %v996 = vpop.f32.mrb[0].mxu0
        %v997 = vpop.f32.mrb[0].mxu0
        %v998 = vadd.f32 %v903, %v997
        %v999 = vpop.f32.mrb[0].mxu0
        %1000 = vmatprep.mubr.bf16.mxu0 0
        %1001 = vmatmul.mubr.bf16.gmra.mrb[0].mxu0 %v878
        %v1002 = vpop.f32.mrb[0].mxu0
        %v1003 = vadd.f32 %v903, %v1002
        %v1004 = vpop.f32.mrb[0].mxu0
        %v1005 = vpop.f32.mrb[0].mxu0
        %v1006 = vadd.f32 %v903, %v1005
        %v1007 = vpop.f32.mrb[0].mxu0
        %1008 = vmatprep.mubr.bf16.mxu0 0
        %1009 = vmatmul.mubr.bf16.gmra.mrb[0].mxu0 %v879
        %v1010 = vpop.f32.mrb[0].mxu0
        %v1011 = vadd.f32 %v903, %v1010
        %v1012 = vpop.f32.mrb[0].mxu0
        %v1013 = vpop.f32.mrb[0].mxu0
        %v1014 = vadd.f32 %v903, %v1013
        %v1015 = vpop.f32.mrb[0].mxu0
        %1016 = vmatprep.mubr.bf16.mxu0 0
        %1017 = vmatmul.mubr.bf16.gmra.mrb[0].mxu0 %v880
        %v1018 = vpop.f32.mrb[0].mxu0
        %v1019 = vadd.f32 %v903, %v1018
        %v1020 = vpop.f32.mrb[0].mxu0
        %v1021 = vpop.f32.mrb[0].mxu0
        %v1022 = vadd.f32 %v903, %v1021
        %v1023 = vpop.f32.mrb[0].mxu0
        %1024 = vmatprep.mubr.bf16.mxu0 0
        %1025 = vmatmul.mubr.bf16.gmra.mrb[0].mxu0 %v881
        %v1026 = vpop.f32.mrb[0].mxu0
        %v1027 = vadd.f32 %v903, %v1026
        %v1028 = vpop.f32.mrb[0].mxu0
        %v1029 = vpop.f32.mrb[0].mxu0
        %v1030 = vadd.f32 %v903, %v1029
        %v1031 = vpop.f32.mrb[0].mxu0
        %1032 = vmatprep.mubr.bf16.mxu0 0
        %1033 = vmatmul.mubr.bf16.gmra.mrb[0].mxu0 %v882
        %v1034 = vpop.f32.mrb[0].mxu0
        %v1035 = vadd.f32 %v903, %v1034
        %v1036 = vpop.f32.mrb[0].mxu0
        %v1037 = vpop.f32.mrb[0].mxu0
        %v1038 = vadd.f32 %v903, %v1037
        %v1039 = vpop.f32.mrb[0].mxu0
        %1040 = vmatprep.mubr.bf16.mxu0 0
        %1041 = vmatmul.mubr.bf16.gmra.mrb[0].mxu0 %v883
        %v1042 = vpop.f32.mrb[0].mxu0
        %v1043 = vadd.f32 %v903, %v1042
        %v1044 = vpop.f32.mrb[0].mxu0
        %v1045 = vpop.f32.mrb[0].mxu0
        %v1046 = vadd.f32 %v903, %v1045
        %v1047 = vpop.f32.mrb[0].mxu0
        %1048 = vdwg.mxu0
        %v1049 = vmax.f32 %v987, 0.0
        %v1050 = vmax.f32 %v990, 0.0
        %v1051 = vmax.f32 %v995, 0.0
        %v1052 = vmax.f32 %v998, 0.0
        %v1053 = vmax.f32 %v1003, 0.0
        %v1054 = vmax.f32 %v1006, 0.0
        %v1055 = vmax.f32 %v1011, 0.0
        %v1056 = vmax.f32 %v1014, 0.0
        %v1057 = vmax.f32 %v1019, 0.0
        %v1058 = vmax.f32 %v1022, 0.0
        %v1059 = vmax.f32 %v1027, 0.0
        %v1060 = vmax.f32 %v1030, 0.0
        %v1061 = vmax.f32 %v1035, 0.0
        %v1062 = vmax.f32 %v1038, 0.0
        %v1063 = vmax.f32 %v1043, 0.0
        %v1064 = vmax.f32 %v1046, 0.0
        %v1065 = vpack.c.bf16 %v1050, %v1049
        %v1066 = vpack.c.bf16 %v1052, %v1051
        %v1067 = vpack.c.bf16 %v1054, %v1053
        %v1068 = vpack.c.bf16 %v1056, %v1055
        %v1069 = vpack.c.bf16 %v1058, %v1057
        %v1070 = vpack.c.bf16 %v1060, %v1059
        %v1071 = vpack.c.bf16 %v1062, %v1061
        %v1072 = vpack.c.bf16 %v1064, %v1063
        %v1073 = vld [vmem:[%s544] sm:$0xf]
        %v1074 = vld [vmem:[%s544 + $0x4] sm:$0xf]
        %v1075 = vld [vmem:[%s544 + $0x8] sm:$0xf]
        %v1076 = vld [vmem:[%s544 + $0xc] sm:$0xf]
        %v1077 = vld [vmem:[%s544 + $0x10] sm:$0xf]
        %v1078 = vld [vmem:[%s544 + $0x14] sm:$0xf]
        %v1079 = vld [vmem:[%s544 + $0x18] sm:$0xf]
        %v1080 = vld [vmem:[%s544 + $0x1c] sm:$0xf]
        %v1081 = vld [vmem:[%s544 + $0x20] sm:$0xf]
        %v1082 = vld [vmem:[%s544 + $0x24] sm:$0xf]
        %v1083 = vld [vmem:[%s544 + $0x28] sm:$0xf]
        %v1084 = vld [vmem:[%s544 + $0x2c] sm:$0xf]
        %v1085 = vld [vmem:[%s544 + $0x30] sm:$0xf]
        %v1086 = vld [vmem:[%s544 + $0x34] sm:$0xf]
        %v1087 = vld [vmem:[%s544 + $0x38] sm:$0xf]
        %v1088 = vld [vmem:[%s544 + $0x3c] sm:$0xf]
        %v1089 = vlaneseq
        %v1090 = vshrl.u32 %v1089, 7
        %v1091 = vsub.s32 1, %v1090
        %v1092 = vrot.slane %v875, %v1091
        %v1109 = vunpack.c.l.b16 %v1073
        %v1110 = vunpack.c.l.b16 %v1074
        %v1111 = vunpack.c.l.b16 %v1075
        %v1112 = vunpack.c.l.b16 %v1076
        %v1113 = vunpack.c.l.b16 %v1077
        %v1114 = vunpack.c.l.b16 %v1078
        %v1115 = vunpack.c.l.b16 %v1079
        %v1116 = vunpack.c.l.b16 %v1080
        %v1117 = vunpack.c.l.b16 %v1081
        %v1118 = vunpack.c.l.b16 %v1082
        %v1119 = vunpack.c.l.b16 %v1083
        %v1120 = vunpack.c.l.b16 %v1084
        %v1121 = vunpack.c.l.b16 %v1085
        %v1122 = vunpack.c.l.b16 %v1086
        %v1123 = vunpack.c.l.b16 %v1087
        %v1124 = vunpack.c.l.b16 %v1088
        %v1125 = vpack.c.b16 %v1110, %v1109
        %v1126 = vpack.c.b16 %v1112, %v1111
        %v1127 = vpack.c.b16 %v1114, %v1113
        %v1128 = vpack.c.b16 %v1116, %v1115
        %v1129 = vpack.c.b16 %v1118, %v1117
        %v1130 = vpack.c.b16 %v1120, %v1119
        %v1131 = vpack.c.b16 %v1122, %v1121
        %v1132 = vpack.c.b16 %v1124, %v1123
        %1141 = vmatprep.subr.bf16.mxu0 0
        %1142 = vmatpush1.bf16.msra.mxu0 %v1125
        %1143 = vmatprep.subr.bf16.mxu0 0
        %1144 = vmatpush1.bf16.msra.mxu0 %v1126
        %1145 = vmatprep.subr.bf16.mxu0 0
        %1146 = vmatpush1.bf16.msra.mxu0 %v1127
        %1147 = vmatprep.subr.bf16.mxu0 0
        %1148 = vmatpush1.bf16.msra.mxu0 %v1128
        %1149 = vmatprep.subr.bf16.mxu0 0
        %1150 = vmatpush1.bf16.msra.mxu0 %v1129
        %1151 = vmatprep.subr.bf16.mxu0 0
        %1152 = vmatpush1.bf16.msra.mxu0 %v1130
        %1153 = vmatprep.subr.bf16.mxu0 0
        %1154 = vmatpush1.bf16.msra.mxu0 %v1131
        %1155 = vmatprep.subr.bf16.mxu0 0
        %1156 = vmatpush1.bf16.msra.mxu0 %v1132
        %1157 = vmatprep.subr.bf16.mxu0 0
        %1158 = vmatpush1.bf16.msra.mxu0 0
        %1159 = vmatprep.subr.bf16.mxu0 0
        %1160 = vmatpush1.bf16.msra.mxu0 0
        %1161 = vmatprep.subr.bf16.mxu0 0
        %1162 = vmatpush1.bf16.msra.mxu0 0
        %1163 = vmatprep.subr.bf16.mxu0 0
        %1164 = vmatpush1.bf16.msra.mxu0 0
        %1165 = vmatprep.subr.bf16.mxu0 0
        %1166 = vmatpush1.bf16.msra.mxu0 0
        %1167 = vmatprep.subr.bf16.mxu0 0
        %1168 = vmatpush1.bf16.msra.mxu0 0
        %1169 = vmatprep.subr.bf16.mxu0 0
        %1170 = vmatpush1.bf16.msra.mxu0 0
        %1171 = vmatprep.subr.bf16.mxu0 0
        %1172 = vmatpush1.bf16.msra.mxu0 0
        %1173 = vmatprep.mubr.bf16.mxu0 0
        %1174 = vmatmul.mubr.bf16.gmra.mrb[0].mxu0 %v1065
        %v1175 = vpop.f32.mrb[0].mxu0
        %v1176 = vadd.f32 %v1092, %v1175
        %v1177 = vpop.f32.mrb[0].mxu0
        %v1178 = vpop.f32.mrb[0].mxu0
        %v1179 = vadd.f32 %v1092, %v1178
        %v1180 = vpop.f32.mrb[0].mxu0
        %1181 = vmatprep.mubr.bf16.mxu0 0
        %1182 = vmatmul.mubr.bf16.gmra.mrb[0].mxu0 %v1066
        %v1183 = vpop.f32.mrb[0].mxu0
        %v1184 = vadd.f32 %v1092, %v1183
        %v1185 = vpop.f32.mrb[0].mxu0
        %v1186 = vpop.f32.mrb[0].mxu0
        %v1187 = vadd.f32 %v1092, %v1186
        %v1188 = vpop.f32.mrb[0].mxu0
        %1189 = vmatprep.mubr.bf16.mxu0 0
        %1190 = vmatmul.mubr.bf16.gmra.mrb[0].mxu0 %v1067
        %v1191 = vpop.f32.mrb[0].mxu0
        %v1192 = vadd.f32 %v1092, %v1191
        %v1193 = vpop.f32.mrb[0].mxu0
        %v1194 = vpop.f32.mrb[0].mxu0
        %v1195 = vadd.f32 %v1092, %v1194
        %v1196 = vpop.f32.mrb[0].mxu0
        %1197 = vmatprep.mubr.bf16.mxu0 0
        %1198 = vmatmul.mubr.bf16.gmra.mrb[0].mxu0 %v1068
        %v1199 = vpop.f32.mrb[0].mxu0
        %v1200 = vadd.f32 %v1092, %v1199
        %v1201 = vpop.f32.mrb[0].mxu0
        %v1202 = vpop.f32.mrb[0].mxu0
        %v1203 = vadd.f32 %v1092, %v1202
        %v1204 = vpop.f32.mrb[0].mxu0
        %1205 = vmatprep.mubr.bf16.mxu0 0
        %1206 = vmatmul.mubr.bf16.gmra.mrb[0].mxu0 %v1069
        %v1207 = vpop.f32.mrb[0].mxu0
        %v1208 = vadd.f32 %v1092, %v1207
        %v1209 = vpop.f32.mrb[0].mxu0
        %v1210 = vpop.f32.mrb[0].mxu0
        %v1211 = vadd.f32 %v1092, %v1210
        %v1212 = vpop.f32.mrb[0].mxu0
        %1213 = vmatprep.mubr.bf16.mxu0 0
        %1214 = vmatmul.mubr.bf16.gmra.mrb[0].mxu0 %v1070
        %v1215 = vpop.f32.mrb[0].mxu0
        %v1216 = vadd.f32 %v1092, %v1215
        %v1217 = vpop.f32.mrb[0].mxu0
        %v1218 = vpop.f32.mrb[0].mxu0
        %v1219 = vadd.f32 %v1092, %v1218
        %v1220 = vpop.f32.mrb[0].mxu0
        %1221 = vmatprep.mubr.bf16.mxu0 0
        %1222 = vmatmul.mubr.bf16.gmra.mrb[0].mxu0 %v1071
        %v1223 = vpop.f32.mrb[0].mxu0
        %v1224 = vadd.f32 %v1092, %v1223
        %v1225 = vpop.f32.mrb[0].mxu0
        %v1226 = vpop.f32.mrb[0].mxu0
        %v1227 = vadd.f32 %v1092, %v1226
        %v1228 = vpop.f32.mrb[0].mxu0
        %1229 = vmatprep.mubr.bf16.mxu0 0
        %1230 = vmatmul.mubr.bf16.gmra.mrb[0].mxu0 %v1072
        %v1231 = vpop.f32.mrb[0].mxu0
        %v1232 = vadd.f32 %v1092, %v1231
        %v1233 = vpop.f32.mrb[0].mxu0
        %v1234 = vpop.f32.mrb[0].mxu0
        %v1235 = vadd.f32 %v1092, %v1234
        %v1236 = vpop.f32.mrb[0].mxu0
        %1237 = vdwg.mxu0
        %v1238 = vmax.f32 %v1176, 0.0
        %v1239 = vmax.f32 %v1179, 0.0
        %v1240 = vmax.f32 %v1184, 0.0
        %v1241 = vmax.f32 %v1187, 0.0
        %v1242 = vmax.f32 %v1192, 0.0
        %v1243 = vmax.f32 %v1195, 0.0
        %v1244 = vmax.f32 %v1200, 0.0
        %v1245 = vmax.f32 %v1203, 0.0
        %v1246 = vmax.f32 %v1208, 0.0
        %v1247 = vmax.f32 %v1211, 0.0
        %v1248 = vmax.f32 %v1216, 0.0
        %v1249 = vmax.f32 %v1219, 0.0
        %v1250 = vmax.f32 %v1224, 0.0
        %v1251 = vmax.f32 %v1227, 0.0
        %v1252 = vmax.f32 %v1232, 0.0
        %v1253 = vmax.f32 %v1235, 0.0
        %v1254 = vlaneseq
        %v1255 = vshrl.u32 %v1254, 7
        %v1256 = vsub.s32 2, %v1255
        %v1257 = vrot.slane %v875, %v1256
        %v1258 = vadd.f32 %v1238, %v1257
        %v1259 = vadd.f32 %v1239, %v1257
        %v1260 = vadd.f32 %v1240, %v1257
        %v1261 = vadd.f32 %v1241, %v1257
        %v1262 = vadd.f32 %v1242, %v1257
        %v1263 = vadd.f32 %v1243, %v1257
        %v1264 = vadd.f32 %v1244, %v1257
        %v1265 = vadd.f32 %v1245, %v1257
        %v1266 = vadd.f32 %v1246, %v1257
        %v1267 = vadd.f32 %v1247, %v1257
        %v1268 = vadd.f32 %v1248, %v1257
        %v1269 = vadd.f32 %v1249, %v1257
        %v1270 = vadd.f32 %v1250, %v1257
        %v1271 = vadd.f32 %v1251, %v1257
        %v1272 = vadd.f32 %v1252, %v1257
        %v1273 = vadd.f32 %v1253, %v1257
        %v1274 = vmax.f32 %v1258, 0.0
        %v1275 = vmax.f32 %v1259, 0.0
        %v1276 = vmax.f32 %v1260, 0.0
        %v1277 = vmax.f32 %v1261, 0.0
        %v1278 = vmax.f32 %v1262, 0.0
        %v1279 = vmax.f32 %v1263, 0.0
        %v1280 = vmax.f32 %v1264, 0.0
        %v1281 = vmax.f32 %v1265, 0.0
        %v1282 = vmax.f32 %v1266, 0.0
        %v1283 = vmax.f32 %v1267, 0.0
        %v1284 = vmax.f32 %v1268, 0.0
        %v1285 = vmax.f32 %v1269, 0.0
        %v1286 = vmax.f32 %v1270, 0.0
        %v1287 = vmax.f32 %v1271, 0.0
        %v1288 = vmax.f32 %v1272, 0.0
        %v1289 = vmax.f32 %v1273, 0.0
        %v1290 = vadd.f32 %v1274, %v1275
        %v1291 = vadd.f32 %v1290, %v1276
        %v1292 = vadd.f32 %v1291, %v1277
        %v1293 = vadd.f32 %v1292, %v1278
        %v1294 = vadd.f32 %v1293, %v1279
        %v1295 = vadd.f32 %v1294, %v1280
        %v1296 = vadd.f32 %v1295, %v1281
        %v1297 = vadd.f32 %v1296, %v1282
        %v1298 = vadd.f32 %v1297, %v1283
        %v1299 = vadd.f32 %v1298, %v1284
        %v1300 = vadd.f32 %v1299, %v1285
        %v1301 = vadd.f32 %v1300, %v1286
        %v1302 = vadd.f32 %v1301, %v1287
        %v1303 = vadd.f32 %v1302, %v1288
        %v1304 = vadd.f32 %v1303, %v1289
        %v1305 = vrot.slane %v1304, 4
        %v1306 = vadd.f32 %v1304, %v1305
        %v1307 = vrot.slane %v1306, 2
        %v1308 = vadd.f32 %v1306, %v1307
        %v1309 = vrot.slane %v1308, 1
        %v1310 = vadd.f32 %v1308, %v1309
        %v1311 = vmul.f32 %v1274, %v1274
        %v1312 = vmul.f32 %v1275, %v1275
        %v1313 = vmul.f32 %v1276, %v1276
        %v1314 = vmul.f32 %v1277, %v1277
        %v1315 = vmul.f32 %v1278, %v1278
        %v1316 = vmul.f32 %v1279, %v1279
        %v1317 = vmul.f32 %v1280, %v1280
        %v1318 = vmul.f32 %v1281, %v1281
        %v1319 = vmul.f32 %v1282, %v1282
        %v1320 = vmul.f32 %v1283, %v1283
        %v1321 = vmul.f32 %v1284, %v1284
        %v1322 = vmul.f32 %v1285, %v1285
        %v1323 = vmul.f32 %v1286, %v1286
        %v1324 = vmul.f32 %v1287, %v1287
        %v1325 = vmul.f32 %v1288, %v1288
        %v1326 = vmul.f32 %v1289, %v1289
        %v1327 = vadd.f32 %v1311, %v1312
        %v1328 = vadd.f32 %v1327, %v1313
        %v1329 = vadd.f32 %v1328, %v1314
        %v1330 = vadd.f32 %v1329, %v1315
        %v1331 = vadd.f32 %v1330, %v1316
        %v1332 = vadd.f32 %v1331, %v1317
        %v1333 = vadd.f32 %v1332, %v1318
        %v1334 = vadd.f32 %v1333, %v1319
        %v1335 = vadd.f32 %v1334, %v1320
        %v1336 = vadd.f32 %v1335, %v1321
        %v1337 = vadd.f32 %v1336, %v1322
        %v1338 = vadd.f32 %v1337, %v1323
        %v1339 = vadd.f32 %v1338, %v1324
        %v1340 = vadd.f32 %v1339, %v1325
        %v1341 = vadd.f32 %v1340, %v1326
        %v1342 = vrot.slane %v1341, 4
        %v1343 = vadd.f32 %v1341, %v1342
        %v1344 = vrot.slane %v1343, 2
        %v1345 = vadd.f32 %v1343, %v1344
        %v1346 = vrot.slane %v1345, 1
        %v1347 = vadd.f32 %v1345, %v1346
        %v1348 = vmul.f32 %v1310, 0.0078125
        %v1349 = vmul.f32 %v1347, 0.0078125
        %v1350 = vmul.f32 %v1348, %v1348
        %v1351 = vsub.f32 %v1349, %v1350
        %v1352 = vsub.f32 %v1274, %v1348
        %v1353 = vsub.f32 %v1275, %v1348
        %v1354 = vsub.f32 %v1276, %v1348
        %v1355 = vsub.f32 %v1277, %v1348
        %v1356 = vsub.f32 %v1278, %v1348
        %v1357 = vsub.f32 %v1279, %v1348
        %v1358 = vsub.f32 %v1280, %v1348
        %v1359 = vsub.f32 %v1281, %v1348
        %v1360 = vsub.f32 %v1282, %v1348
        %v1361 = vsub.f32 %v1283, %v1348
        %v1362 = vsub.f32 %v1284, %v1348
        %v1363 = vsub.f32 %v1285, %v1348
        %v1364 = vsub.f32 %v1286, %v1348
        %v1365 = vsub.f32 %v1287, %v1348
        %v1366 = vsub.f32 %v1288, %v1348
        %v1367 = vsub.f32 %v1289, %v1348
        %v1368 = vadd.f32 %v1351, 1e-05
        %v1369 = vrsqrt.pop %v1368
        %v1370 = vmul.f32 %v1352, %v1369
        %v1371 = vmul.f32 %v1353, %v1369
        %v1372 = vmul.f32 %v1354, %v1369
        %v1373 = vmul.f32 %v1355, %v1369
        %v1374 = vmul.f32 %v1356, %v1369
        %v1375 = vmul.f32 %v1357, %v1369
        %v1376 = vmul.f32 %v1358, %v1369
        %v1377 = vmul.f32 %v1359, %v1369
        %v1378 = vmul.f32 %v1360, %v1369
        %v1379 = vmul.f32 %v1361, %v1369
        %v1380 = vmul.f32 %v1362, %v1369
        %v1381 = vmul.f32 %v1363, %v1369
        %v1382 = vmul.f32 %v1364, %v1369
        %v1383 = vmul.f32 %v1365, %v1369
        %v1384 = vmul.f32 %v1366, %v1369
        %v1385 = vmul.f32 %v1367, %v1369
        %v1386 = vlaneseq
        %v1387 = vshrl.u32 %v1386, 7
        %v1388 = vsub.s32 3, %v1387
        %v1389 = vrot.slane %v875, %v1388
        %v1390 = vmul.f32 %v1370, %v1389
        %v1391 = vmul.f32 %v1371, %v1389
        %v1392 = vmul.f32 %v1372, %v1389
        %v1393 = vmul.f32 %v1373, %v1389
        %v1394 = vmul.f32 %v1374, %v1389
        %v1395 = vmul.f32 %v1375, %v1389
        %v1396 = vmul.f32 %v1376, %v1389
        %v1397 = vmul.f32 %v1377, %v1389
        %v1398 = vmul.f32 %v1378, %v1389
        %v1399 = vmul.f32 %v1379, %v1389
        %v1400 = vmul.f32 %v1380, %v1389
        %v1401 = vmul.f32 %v1381, %v1389
        %v1402 = vmul.f32 %v1382, %v1389
        %v1403 = vmul.f32 %v1383, %v1389
        %v1404 = vmul.f32 %v1384, %v1389
        %v1405 = vmul.f32 %v1385, %v1389
        %v1406 = vlaneseq
        %v1407 = vshrl.u32 %v1406, 7
        %v1408 = vsub.s32 4, %v1407
        %v1409 = vrot.slane %v875, %v1408
        %v1410 = vadd.f32 %v1390, %v1409
        %v1411 = vadd.f32 %v1391, %v1409
        %v1412 = vadd.f32 %v1392, %v1409
        %v1413 = vadd.f32 %v1393, %v1409
        %v1414 = vadd.f32 %v1394, %v1409
        %v1415 = vadd.f32 %v1395, %v1409
        %v1416 = vadd.f32 %v1396, %v1409
        %v1417 = vadd.f32 %v1397, %v1409
        %v1418 = vadd.f32 %v1398, %v1409
        %v1419 = vadd.f32 %v1399, %v1409
        %v1420 = vadd.f32 %v1400, %v1409
        %v1421 = vadd.f32 %v1401, %v1409
        %v1422 = vadd.f32 %v1402, %v1409
        %v1423 = vadd.f32 %v1403, %v1409
        %v1424 = vadd.f32 %v1404, %v1409
        %v1425 = vadd.f32 %v1405, %v1409
        %1426 = vst [vmem:[#allocation2] sm:$0xff] %v1410
        %1427 = vst [vmem:[#allocation2 + $0x8] sm:$0xff] %v1411
        %1428 = vst [vmem:[#allocation2 + $0x10] sm:$0xff] %v1412
        %1429 = vst [vmem:[#allocation2 + $0x18] sm:$0xff] %v1413
        %1430 = vst [vmem:[#allocation2 + $0x20] sm:$0xff] %v1414
        %1431 = vst [vmem:[#allocation2 + $0x28] sm:$0xff] %v1415
        %1432 = vst [vmem:[#allocation2 + $0x30] sm:$0xff] %v1416
        %1433 = vst [vmem:[#allocation2 + $0x38] sm:$0xff] %v1417
        %1434 = vst [vmem:[#allocation2 + $0x40] sm:$0xff] %v1418
        %1435 = vst [vmem:[#allocation2 + $0x48] sm:$0xff] %v1419
        %1436 = vst [vmem:[#allocation2 + $0x50] sm:$0xff] %v1420
        %1437 = vst [vmem:[#allocation2 + $0x58] sm:$0xff] %v1421
        %1438 = vst [vmem:[#allocation2 + $0x60] sm:$0xff] %v1422
        %1439 = vst [vmem:[#allocation2 + $0x68] sm:$0xff] %v1423
        %1440 = vst [vmem:[#allocation2 + $0x70] sm:$0xff] %v1424
        %1441 = vst [vmem:[#allocation2 + $0x78] sm:$0xff] %v1425
        %1442 = vst [vmem:[%s620] sm:$0xff] %v1410
        %1443 = vst [vmem:[%s620 + $0x8] sm:$0xff] %v1411
        %1444 = vst [vmem:[%s620 + $0x10] sm:$0xff] %v1412
        %1445 = vst [vmem:[%s620 + $0x18] sm:$0xff] %v1413
        %1446 = vst [vmem:[%s620 + $0x20] sm:$0xff] %v1414
        %1447 = vst [vmem:[%s620 + $0x28] sm:$0xff] %v1415
        %1448 = vst [vmem:[%s620 + $0x30] sm:$0xff] %v1416
        %1449 = vst [vmem:[%s620 + $0x38] sm:$0xff] %v1417
        %1450 = vst [vmem:[%s620 + $0x40] sm:$0xff] %v1418
        %1451 = vst [vmem:[%s620 + $0x48] sm:$0xff] %v1419
        %1452 = vst [vmem:[%s620 + $0x50] sm:$0xff] %v1420
        %1453 = vst [vmem:[%s620 + $0x58] sm:$0xff] %v1421
        %1454 = vst [vmem:[%s620 + $0x60] sm:$0xff] %v1422
        %1455 = vst [vmem:[%s620 + $0x68] sm:$0xff] %v1423
        %1456 = vst [vmem:[%s620 + $0x70] sm:$0xff] %v1424
        %1457 = vst [vmem:[%s620 + $0x78] sm:$0xff] %v1425
        %v1458 = vld [vmem:[%s6] sm:$0xf]
        %v1459 = vpack.c.bf16 %v1411, %v1410
        %v1460 = vpack.c.bf16 %v1413, %v1412
        %v1461 = vpack.c.bf16 %v1415, %v1414
        %v1462 = vpack.c.bf16 %v1417, %v1416
        %v1463 = vpack.c.bf16 %v1419, %v1418
        %v1464 = vpack.c.bf16 %v1421, %v1420
        %v1465 = vpack.c.bf16 %v1423, %v1422
        %v1466 = vpack.c.bf16 %v1425, %v1424
        %1467 = vmatprep.subr.bf16.mxu0 0
        %1468 = vmatpush1.bf16.msra.mxu0 %v1459
        %1469 = vmatprep.subr.bf16.mxu0 0
        %1470 = vmatpush1.bf16.msra.mxu0 %v1460
        %1471 = vmatprep.subr.bf16.mxu0 0
        %1472 = vmatpush1.bf16.msra.mxu0 %v1461
        %1473 = vmatprep.subr.bf16.mxu0 0
        %1474 = vmatpush1.bf16.msra.mxu0 %v1462
        %1475 = vmatprep.subr.bf16.mxu0 0
        %1476 = vmatpush1.bf16.msra.mxu0 %v1463
        %1477 = vmatprep.subr.bf16.mxu0 0
        %1478 = vmatpush1.bf16.msra.mxu0 %v1464
        %1479 = vmatprep.subr.bf16.mxu0 0
        %1480 = vmatpush1.bf16.msra.mxu0 %v1465
        %1481 = vmatprep.subr.bf16.mxu0 0
        %1482 = vmatpush1.bf16.msra.mxu0 %v1466
        %1483 = vmatprep.subr.bf16.mxu0 0
        %1484 = vmatpush1.bf16.msra.mxu0 0
        %1485 = vmatprep.subr.bf16.mxu0 0
        %1486 = vmatpush1.bf16.msra.mxu0 0
        %1487 = vmatprep.subr.bf16.mxu0 0
        %1488 = vmatpush1.bf16.msra.mxu0 0
        %1489 = vmatprep.subr.bf16.mxu0 0
        %1490 = vmatpush1.bf16.msra.mxu0 0
        %1491 = vmatprep.subr.bf16.mxu0 0
        %1492 = vmatpush1.bf16.msra.mxu0 0
        %1493 = vmatprep.subr.bf16.mxu0 0
        %1494 = vmatpush1.bf16.msra.mxu0 0
        %1495 = vmatprep.subr.bf16.mxu0 0
        %1496 = vmatpush1.bf16.msra.mxu0 0
        %1497 = vmatprep.subr.bf16.mxu0 0
        %1498 = vmatpush1.bf16.msra.mxu0 0
        %1499 = vmatprep.mubr.bf16.mxu0 0
        %1500 = vmatmul.mubr.bf16.gmra.mrb[0].mxu0 %v1458
        %v1501 = vpop.f32.mrb[0].mxu0
        %v1502 = vadd.f32 0.0, %v1501
        %v1503 = vpop.f32.mrb[0].mxu0
        %v1504 = vpop.f32.mrb[0].mxu0
        %v1505 = vpop.f32.mrb[0].mxu0
        %1506 = vdwg.mxu0
        %1507 = vst [vmem:[%s627] sm:$0xff] %v1502
        %v1508 = vld [vmem:[#allocation3] sm:$0xff]
        %v1509 = vld [vmem:[#allocation3 + $0x8] sm:$0xff]
        %v1510 = vld [vmem:[#allocation3 + $0x10] sm:$0xff]
        %v1511 = vpack.c.bf16 %v1502, %v1502
        %v1512 = vld [vmem:[%s562] sm:$0xff]
        %v1513 = vld [vmem:[%s562 + $0x8] sm:$0xf]
        %v1514 = vld [vmem:[%s562 + $0xc] sm:$0xff]
        %v1515 = vld [vmem:[%s562 + $0x14] sm:$0xf]
        %v1516 = vld [vmem:[%s562 + $0x18] sm:$0xff]
        %v1517 = vld [vmem:[%s562 + $0x20] sm:$0xf]
        %v1518 = vld [vmem:[%s562 + $0x24] sm:$0xff]
        %v1519 = vld [vmem:[%s562 + $0x2c] sm:$0xf]
        %v1520 = vld [vmem:[%s562 + $0x30] sm:$0xff]
        %v1521 = vld [vmem:[%s562 + $0x38] sm:$0xf]
        %v1522 = vld [vmem:[%s562 + $0x3c] sm:$0xff]
        %v1523 = vld [vmem:[%s562 + $0x44] sm:$0xf]
        %v1524 = vld [vmem:[%s562 + $0x48] sm:$0xff]
        %v1525 = vld [vmem:[%s562 + $0x50] sm:$0xf]
        %v1526 = vld [vmem:[%s562 + $0x54] sm:$0xff]
        %v1527 = vld [vmem:[%s562 + $0x5c] sm:$0xf]
        %v1528 = vld [vmem:[%s562 + $0x60] sm:$0xff]
        %v1529 = vld [vmem:[%s562 + $0x68] sm:$0xf]
        %v1530 = vld [vmem:[%s562 + $0x6c] sm:$0xff]
        %v1531 = vld [vmem:[%s562 + $0x74] sm:$0xf]
        %v1532 = vld [vmem:[%s562 + $0x78] sm:$0xff]
        %v1533 = vld [vmem:[%s562 + $0x80] sm:$0xf]
        %v1534 = vld [vmem:[%s562 + $0x84] sm:$0xff]
        %v1535 = vld [vmem:[%s562 + $0x8c] sm:$0xf]
        %v1536 = vld [vmem:[%s562 + $0x90] sm:$0xff]
        %v1537 = vld [vmem:[%s562 + $0x98] sm:$0xf]
        %v1538 = vld [vmem:[%s562 + $0x9c] sm:$0xff]
        %v1539 = vld [vmem:[%s562 + $0xa4] sm:$0xf]
        %v1540 = vld [vmem:[%s562 + $0xa8] sm:$0xff]
        %v1541 = vld [vmem:[%s562 + $0xb0] sm:$0xf]
        %v1542 = vld [vmem:[%s562 + $0xb4] sm:$0xff]
        %v1543 = vld [vmem:[%s562 + $0xbc] sm:$0xf]
        %v1576 = vunpack.c.l.b16 %v1512
        %v1577 = vunpack.c.h.b16 %v1512
        %v1578 = vunpack.c.l.b16 %v1513
        %v1579 = vunpack.c.l.b16 %v1514
        %v1580 = vunpack.c.h.b16 %v1514
        %v1581 = vunpack.c.l.b16 %v1515
        %v1582 = vunpack.c.l.b16 %v1516
        %v1583 = vunpack.c.h.b16 %v1516
        %v1584 = vunpack.c.l.b16 %v1517
        %v1585 = vunpack.c.l.b16 %v1518
        %v1586 = vunpack.c.h.b16 %v1518
        %v1587 = vunpack.c.l.b16 %v1519
        %v1588 = vunpack.c.l.b16 %v1520
        %v1589 = vunpack.c.h.b16 %v1520
        %v1590 = vunpack.c.l.b16 %v1521
        %v1591 = vunpack.c.l.b16 %v1522
        %v1592 = vunpack.c.h.b16 %v1522
        %v1593 = vunpack.c.l.b16 %v1523
        %v1594 = vunpack.c.l.b16 %v1524
        %v1595 = vunpack.c.h.b16 %v1524
        %v1596 = vunpack.c.l.b16 %v1525
        %v1597 = vunpack.c.l.b16 %v1526
        %v1598 = vunpack.c.h.b16 %v1526
        %v1599 = vunpack.c.l.b16 %v1527
        %v1600 = vunpack.c.l.b16 %v1528
        %v1601 = vunpack.c.h.b16 %v1528
        %v1602 = vunpack.c.l.b16 %v1529
        %v1603 = vunpack.c.l.b16 %v1530
        %v1604 = vunpack.c.h.b16 %v1530
        %v1605 = vunpack.c.l.b16 %v1531
        %v1606 = vunpack.c.l.b16 %v1532
        %v1607 = vunpack.c.h.b16 %v1532
        %v1608 = vunpack.c.l.b16 %v1533
        %v1609 = vunpack.c.l.b16 %v1534
        %v1610 = vunpack.c.h.b16 %v1534
        %v1611 = vunpack.c.l.b16 %v1535
        %v1612 = vunpack.c.l.b16 %v1536
        %v1613 = vunpack.c.h.b16 %v1536
        %v1614 = vunpack.c.l.b16 %v1537
        %v1615 = vunpack.c.l.b16 %v1538
        %v1616 = vunpack.c.h.b16 %v1538
        %v1617 = vunpack.c.l.b16 %v1539
        %v1618 = vunpack.c.l.b16 %v1540
        %v1619 = vunpack.c.h.b16 %v1540
        %v1620 = vunpack.c.l.b16 %v1541
        %v1621 = vunpack.c.l.b16 %v1542
        %v1622 = vunpack.c.h.b16 %v1542
        %v1623 = vunpack.c.l.b16 %v1543
        %v1624 = vpack.c.b16 %v1579, %v1576
        %v1625 = vpack.c.b16 %v1580, %v1577
        %v1626 = vpack.c.b16 %v1581, %v1578
        %v1627 = vpack.c.b16 %v1585, %v1582
        %v1628 = vpack.c.b16 %v1586, %v1583
        %v1629 = vpack.c.b16 %v1587, %v1584
        %v1630 = vpack.c.b16 %v1591, %v1588
        %v1631 = vpack.c.b16 %v1592, %v1589
        %v1632 = vpack.c.b16 %v1593, %v1590
        %v1633 = vpack.c.b16 %v1597, %v1594
        %v1634 = vpack.c.b16 %v1598, %v1595
        %v1635 = vpack.c.b16 %v1599, %v1596
        %v1636 = vpack.c.b16 %v1603, %v1600
        %v1637 = vpack.c.b16 %v1604, %v1601
        %v1638 = vpack.c.b16 %v1605, %v1602
        %v1639 = vpack.c.b16 %v1609, %v1606
        %v1640 = vpack.c.b16 %v1610, %v1607
        %v1641 = vpack.c.b16 %v1611, %v1608
        %v1642 = vpack.c.b16 %v1615, %v1612
        %v1643 = vpack.c.b16 %v1616, %v1613
        %v1644 = vpack.c.b16 %v1617, %v1614
        %v1645 = vpack.c.b16 %v1621, %v1618
        %v1646 = vpack.c.b16 %v1622, %v1619
        %v1647 = vpack.c.b16 %v1623, %v1620
        %1672 = vmatprep.subr.bf16.mxu0 %v1625
        %1673 = vmatpush1.bf16.msra.mxu0 %v1624
        %1674 = vmatprep.subr.bf16.mxu0 %v1628
        %1675 = vmatpush1.bf16.msra.mxu0 %v1627
        %1676 = vmatprep.subr.bf16.mxu0 %v1631
        %1677 = vmatpush1.bf16.msra.mxu0 %v1630
        %1678 = vmatprep.subr.bf16.mxu0 %v1634
        %1679 = vmatpush1.bf16.msra.mxu0 %v1633
        %1680 = vmatprep.subr.bf16.mxu0 %v1637
        %1681 = vmatpush1.bf16.msra.mxu0 %v1636
        %1682 = vmatprep.subr.bf16.mxu0 %v1640
        %1683 = vmatpush1.bf16.msra.mxu0 %v1639
        %1684 = vmatprep.subr.bf16.mxu0 %v1643
        %1685 = vmatpush1.bf16.msra.mxu0 %v1642
        %1686 = vmatprep.subr.bf16.mxu0 %v1646
        %1687 = vmatpush1.bf16.msra.mxu0 %v1645
        %1688 = vmatprep.subr.bf16.mxu0 0
        %1689 = vmatpush1.bf16.msra.mxu0 0
        %1690 = vmatprep.subr.bf16.mxu0 0
        %1691 = vmatpush1.bf16.msra.mxu0 0
        %1692 = vmatprep.subr.bf16.mxu0 0
        %1693 = vmatpush1.bf16.msra.mxu0 0
        %1694 = vmatprep.subr.bf16.mxu0 0
        %1695 = vmatpush1.bf16.msra.mxu0 0
        %1696 = vmatprep.subr.bf16.mxu0 0
        %1697 = vmatpush1.bf16.msra.mxu0 0
        %1698 = vmatprep.subr.bf16.mxu0 0
        %1699 = vmatpush1.bf16.msra.mxu0 0
        %1700 = vmatprep.subr.bf16.mxu0 0
        %1701 = vmatpush1.bf16.msra.mxu0 0
        %1702 = vmatprep.subr.bf16.mxu0 0
        %1703 = vmatpush1.bf16.msra.mxu0 0
        %1704 = vmatprep.mubr.bf16.mxu0 0
        %1705 = vmatmul.mubr.bf16.gmra.mrb[0].mxu0 %v1511
        %v1706 = vpop.f32.mrb[0].mxu0
        %v1707 = vadd.f32 0.0, %v1706
        %v1708 = vpop.f32.mrb[0].mxu0
        %v1709 = vadd.f32 0.0, %v1708
        %v1710 = vpop.f32.mrb[0].mxu0
        %v1711 = vpop.f32.mrb[0].mxu0
        %1712 = vdwg.mxu0
        %1713 = vmatprep.subr.bf16.mxu0 0
        %1714 = vmatpush1.bf16.msra.mxu0 %v1626
        %1715 = vmatprep.subr.bf16.mxu0 0
        %1716 = vmatpush1.bf16.msra.mxu0 %v1629
        %1717 = vmatprep.subr.bf16.mxu0 0
        %1718 = vmatpush1.bf16.msra.mxu0 %v1632
        %1719 = vmatprep.subr.bf16.mxu0 0
        %1720 = vmatpush1.bf16.msra.mxu0 %v1635
        %1721 = vmatprep.subr.bf16.mxu0 0
        %1722 = vmatpush1.bf16.msra.mxu0 %v1638
        %1723 = vmatprep.subr.bf16.mxu0 0
        %1724 = vmatpush1.bf16.msra.mxu0 %v1641
        %1725 = vmatprep.subr.bf16.mxu0 0
        %1726 = vmatpush1.bf16.msra.mxu0 %v1644
        %1727 = vmatprep.subr.bf16.mxu0 0
        %1728 = vmatpush1.bf16.msra.mxu0 %v1647
        %1729 = vmatprep.subr.bf16.mxu0 0
        %1730 = vmatpush1.bf16.msra.mxu0 0
        %1731 = vmatprep.subr.bf16.mxu0 0
        %1732 = vmatpush1.bf16.msra.mxu0 0
        %1733 = vmatprep.subr.bf16.mxu0 0
        %1734 = vmatpush1.bf16.msra.mxu0 0
        %1735 = vmatprep.subr.bf16.mxu0 0
        %1736 = vmatpush1.bf16.msra.mxu0 0
        %1737 = vmatprep.subr.bf16.mxu0 0
        %1738 = vmatpush1.bf16.msra.mxu0 0
        %1739 = vmatprep.subr.bf16.mxu0 0
        %1740 = vmatpush1.bf16.msra.mxu0 0
        %1741 = vmatprep.subr.bf16.mxu0 0
        %1742 = vmatpush1.bf16.msra.mxu0 0
        %1743 = vmatprep.subr.bf16.mxu0 0
        %1744 = vmatpush1.bf16.msra.mxu0 0
        %1745 = vmatprep.mubr.bf16.mxu0 0
        %1746 = vmatmul.mubr.bf16.gmra.mrb[0].mxu0 %v1511
        %v1747 = vpop.f32.mrb[0].mxu0
        %v1748 = vadd.f32 0.0, %v1747
        %v1749 = vpop.f32.mrb[0].mxu0
        %v1750 = vpop.f32.mrb[0].mxu0
        %v1751 = vpop.f32.mrb[0].mxu0
        %1752 = vdwg.mxu0
        %v1753 = vadd.f32 %v1508, %v1707
        %v1754 = vadd.f32 %v1509, %v1709
        %v1755 = vadd.f32 %v1510, %v1748
        %1756 = vst [vmem:[#allocation3] sm:$0xff] %v1753
        %1757 = vst [vmem:[#allocation3 + $0x8] sm:$0xff] %v1754
        %1758 = vst [vmem:[#allocation3 + $0x10] sm:$0xff] %v1755
        %p1759 = scmp.eq.s32.totalorder %s34, 2
        // Predicated region
        $region101: #{simclr_forward.1} parent=63 // pred_check
          %p1760 = pneg %p1759
        $region102: #{simclr_forward.1} parent=63 // pred_check_branch
          %1762 = sbr.rel (%p1760) target = $region104
        $region103: #{simclr_forward.1} parent=63 // pred_region
          %v1763 = vld [vmem:[#allocation3] sm:$0xff]
          %v1764 = vld [vmem:[#allocation3 + $0x8] sm:$0xff]
          %v1765 = vld [vmem:[#allocation3 + $0x10] sm:$0xff]
          %v1766 = vld [vmem:[%s9] sm:$0x7]
          %v1768 = vlaneseq
          %v1769 = vshrl.u32 %v1768, 7
          %v1770 = vsub.s32 0, %v1769
          %v1771 = vrot.slane %v1766, %v1770
          %v1772 = vlaneseq
          %v1773 = vshrl.u32 %v1772, 7
          %v1774 = vsub.s32 1, %v1773
          %v1775 = vrot.slane %v1766, %v1774
          %v1776 = vlaneseq
          %v1777 = vshrl.u32 %v1776, 7
          %v1778 = vsub.s32 2, %v1777
          %v1779 = vrot.slane %v1766, %v1778
          %v1783 = vadd.f32 %v1763, %v1771
          %v1784 = vadd.f32 %v1764, %v1775
          %v1785 = vadd.f32 %v1765, %v1779
          %v1786 = vmax.f32 %v1783, 0.0
          %v1787 = vmax.f32 %v1784, 0.0
          %v1788 = vmax.f32 %v1785, 0.0
          %v1789 = vpack.c.bf16 %v1786, %v1786
          %v1790 = vpack.c.bf16 %v1787, %v1787
          %v1791 = vpack.c.bf16 %v1788, %v1788
          %v1792 = vld [vmem:[#allocation15] sm:$0xff]
          %v1793 = vld [vmem:[#allocation15 + $0x8] sm:$0xf]
          %v1794 = vld [vmem:[#allocation15 + $0xc] sm:$0xff]
          %v1795 = vld [vmem:[#allocation15 + $0x14] sm:$0xf]
          %v1796 = vld [vmem:[#allocation15 + $0x18] sm:$0xff]
          %v1797 = vld [vmem:[#allocation15 + $0x20] sm:$0xf]
          %v1798 = vld [vmem:[#allocation15 + $0x24] sm:$0xff]
          %v1799 = vld [vmem:[#allocation15 + $0x2c] sm:$0xf]
          %v1800 = vld [vmem:[#allocation15 + $0x30] sm:$0xff]
          %v1801 = vld [vmem:[#allocation15 + $0x38] sm:$0xf]
          %v1802 = vld [vmem:[#allocation15 + $0x3c] sm:$0xff]
          %v1803 = vld [vmem:[#allocation15 + $0x44] sm:$0xf]
          %v1804 = vld [vmem:[#allocation15 + $0x48] sm:$0xff]
          %v1805 = vld [vmem:[#allocation15 + $0x50] sm:$0xf]
          %v1806 = vld [vmem:[#allocation15 + $0x54] sm:$0xff]
          %v1807 = vld [vmem:[#allocation15 + $0x5c] sm:$0xf]
          %v1808 = vld [vmem:[#allocation15 + $0x60] sm:$0xff]
          %v1809 = vld [vmem:[#allocation15 + $0x68] sm:$0xf]
          %v1810 = vld [vmem:[#allocation15 + $0x6c] sm:$0xff]
          %v1811 = vld [vmem:[#allocation15 + $0x74] sm:$0xf]
          %v1812 = vld [vmem:[#allocation15 + $0x78] sm:$0xff]
          %v1813 = vld [vmem:[#allocation15 + $0x80] sm:$0xf]
          %v1814 = vld [vmem:[#allocation15 + $0x84] sm:$0xff]
          %v1815 = vld [vmem:[#allocation15 + $0x8c] sm:$0xf]
          %v1816 = vld [vmem:[#allocation15 + $0x90] sm:$0xff]
          %v1817 = vld [vmem:[#allocation15 + $0x98] sm:$0xf]
          %v1818 = vld [vmem:[#allocation15 + $0x9c] sm:$0xff]
          %v1819 = vld [vmem:[#allocation15 + $0xa4] sm:$0xf]
          %v1820 = vld [vmem:[#allocation15 + $0xa8] sm:$0xff]
          %v1821 = vld [vmem:[#allocation15 + $0xb0] sm:$0xf]
          %v1822 = vld [vmem:[#allocation15 + $0xb4] sm:$0xff]
          %v1823 = vld [vmem:[#allocation15 + $0xbc] sm:$0xf]
          %v1824 = vld [vmem:[#allocation15 + $0xc0] sm:$0xff]
          %v1825 = vld [vmem:[#allocation15 + $0xc8] sm:$0xf]
          %v1826 = vld [vmem:[#allocation15 + $0xcc] sm:$0xff]
          %v1827 = vld [vmem:[#allocation15 + $0xd4] sm:$0xf]
          %v1828 = vld [vmem:[#allocation15 + $0xd8] sm:$0xff]
          %v1829 = vld [vmem:[#allocation15 + $0xe0] sm:$0xf]
          %v1830 = vld [vmem:[#allocation15 + $0xe4] sm:$0xff]
          %v1831 = vld [vmem:[#allocation15 + $0xec] sm:$0xf]
          %v1832 = vld [vmem:[#allocation15 + $0xf0] sm:$0xff]
          %v1833 = vld [vmem:[#allocation15 + $0xf8] sm:$0xf]
          %v1834 = vld [vmem:[#allocation15 + $0xfc] sm:$0xff]
          %v1835 = vld [vmem:[#allocation15 + $0x104] sm:$0xf]
          %v1836 = vld [vmem:[#allocation15 + $0x108] sm:$0xff]
          %v1837 = vld [vmem:[#allocation15 + $0x110] sm:$0xf]
          %v1838 = vld [vmem:[#allocation15 + $0x114] sm:$0xff]
          %v1839 = vld [vmem:[#allocation15 + $0x11c] sm:$0xf]
          %v1840 = vld [vmem:[#allocation15 + $0x120] sm:$0xff]
          %v1841 = vld [vmem:[#allocation15 + $0x128] sm:$0xf]
          %v1842 = vld [vmem:[#allocation15 + $0x12c] sm:$0xff]
          %v1843 = vld [vmem:[#allocation15 + $0x134] sm:$0xf]
          %v1844 = vld [vmem:[#allocation15 + $0x138] sm:$0xff]
          %v1845 = vld [vmem:[#allocation15 + $0x140] sm:$0xf]
          %v1846 = vld [vmem:[#allocation15 + $0x144] sm:$0xff]
          %v1847 = vld [vmem:[#allocation15 + $0x14c] sm:$0xf]
          %v1848 = vld [vmem:[#allocation15 + $0x150] sm:$0xff]
          %v1849 = vld [vmem:[#allocation15 + $0x158] sm:$0xf]
          %v1850 = vld [vmem:[#allocation15 + $0x15c] sm:$0xff]
          %v1851 = vld [vmem:[#allocation15 + $0x164] sm:$0xf]
          %v1852 = vld [vmem:[#allocation15 + $0x168] sm:$0xff]
          %v1853 = vld [vmem:[#allocation15 + $0x170] sm:$0xf]
          %v1854 = vld [vmem:[#allocation15 + $0x174] sm:$0xff]
          %v1855 = vld [vmem:[#allocation15 + $0x17c] sm:$0xf]
          %v1856 = vld [vmem:[#allocation15 + $0x180] sm:$0xff]
          %v1857 = vld [vmem:[#allocation15 + $0x188] sm:$0xf]
          %v1858 = vld [vmem:[#allocation15 + $0x18c] sm:$0xff]
          %v1859 = vld [vmem:[#allocation15 + $0x194] sm:$0xf]
          %v1860 = vld [vmem:[#allocation15 + $0x198] sm:$0xff]
          %v1861 = vld [vmem:[#allocation15 + $0x1a0] sm:$0xf]
          %v1862 = vld [vmem:[#allocation15 + $0x1a4] sm:$0xff]
          %v1863 = vld [vmem:[#allocation15 + $0x1ac] sm:$0xf]
          %v1864 = vld [vmem:[#allocation15 + $0x1b0] sm:$0xff]
          %v1865 = vld [vmem:[#allocation15 + $0x1b8] sm:$0xf]
          %v1866 = vld [vmem:[#allocation15 + $0x1bc] sm:$0xff]
          %v1867 = vld [vmem:[#allocation15 + $0x1c4] sm:$0xf]
          %v1868 = vld [vmem:[#allocation15 + $0x1c8] sm:$0xff]
          %v1869 = vld [vmem:[#allocation15 + $0x1d0] sm:$0xf]
          %v1870 = vld [vmem:[#allocation15 + $0x1d4] sm:$0xff]
          %v1871 = vld [vmem:[#allocation15 + $0x1dc] sm:$0xf]
          %v1872 = vld [vmem:[#allocation15 + $0x1e0] sm:$0xff]
          %v1873 = vld [vmem:[#allocation15 + $0x1e8] sm:$0xf]
          %v1874 = vld [vmem:[#allocation15 + $0x1ec] sm:$0xff]
          %v1875 = vld [vmem:[#allocation15 + $0x1f4] sm:$0xf]
          %v1876 = vld [vmem:[#allocation15 + $0x1f8] sm:$0xff]
          %v1877 = vld [vmem:[#allocation15 + $0x200] sm:$0xf]
          %v1878 = vld [vmem:[#allocation15 + $0x204] sm:$0xff]
          %v1879 = vld [vmem:[#allocation15 + $0x20c] sm:$0xf]
          %v1880 = vld [vmem:[#allocation15 + $0x210] sm:$0xff]
          %v1881 = vld [vmem:[#allocation15 + $0x218] sm:$0xf]
          %v1882 = vld [vmem:[#allocation15 + $0x21c] sm:$0xff]
          %v1883 = vld [vmem:[#allocation15 + $0x224] sm:$0xf]
          %v1884 = vld [vmem:[#allocation15 + $0x228] sm:$0xff]
          %v1885 = vld [vmem:[#allocation15 + $0x230] sm:$0xf]
          %v1886 = vld [vmem:[#allocation15 + $0x234] sm:$0xff]
          %v1887 = vld [vmem:[#allocation15 + $0x23c] sm:$0xf]
          %v1888 = vld [vmem:[%s10] sm:$0x7]
          %v1890 = vlaneseq
          %v1891 = vshrl.u32 %v1890, 7
          %v1892 = vsub.s32 0, %v1891
          %v1893 = vrot.slane %v1888, %v1892
          %v1894 = vlaneseq
          %v1895 = vshrl.u32 %v1894, 7
          %v1896 = vsub.s32 1, %v1895
          %v1897 = vrot.slane %v1888, %v1896
          %v1898 = vlaneseq
          %v1899 = vshrl.u32 %v1898, 7
          %v1900 = vsub.s32 2, %v1899
          %v1901 = vrot.slane %v1888, %v1900
          %v2001 = vunpack.c.l.b16 %v1792
          %v2002 = vunpack.c.h.b16 %v1792
          %v2003 = vunpack.c.l.b16 %v1793
          %v2004 = vunpack.c.l.b16 %v1794
          %v2005 = vunpack.c.h.b16 %v1794
          %v2006 = vunpack.c.l.b16 %v1795
          %v2007 = vunpack.c.l.b16 %v1796
          %v2008 = vunpack.c.h.b16 %v1796
          %v2009 = vunpack.c.l.b16 %v1797
          %v2010 = vunpack.c.l.b16 %v1798
          %v2011 = vunpack.c.h.b16 %v1798
          %v2012 = vunpack.c.l.b16 %v1799
          %v2013 = vunpack.c.l.b16 %v1800
          %v2014 = vunpack.c.h.b16 %v1800
          %v2015 = vunpack.c.l.b16 %v1801
          %v2016 = vunpack.c.l.b16 %v1802
          %v2017 = vunpack.c.h.b16 %v1802
          %v2018 = vunpack.c.l.b16 %v1803
          %v2019 = vunpack.c.l.b16 %v1804
          %v2020 = vunpack.c.h.b16 %v1804
          %v2021 = vunpack.c.l.b16 %v1805
          %v2022 = vunpack.c.l.b16 %v1806
          %v2023 = vunpack.c.h.b16 %v1806
          %v2024 = vunpack.c.l.b16 %v1807
          %v2025 = vunpack.c.l.b16 %v1808
          %v2026 = vunpack.c.h.b16 %v1808
          %v2027 = vunpack.c.l.b16 %v1809
          %v2028 = vunpack.c.l.b16 %v1810
          %v2029 = vunpack.c.h.b16 %v1810
          %v2030 = vunpack.c.l.b16 %v1811
          %v2031 = vunpack.c.l.b16 %v1812
          %v2032 = vunpack.c.h.b16 %v1812
          %v2033 = vunpack.c.l.b16 %v1813
          %v2034 = vunpack.c.l.b16 %v1814
          %v2035 = vunpack.c.h.b16 %v1814
          %v2036 = vunpack.c.l.b16 %v1815
          %v2037 = vunpack.c.l.b16 %v1816
          %v2038 = vunpack.c.h.b16 %v1816
          %v2039 = vunpack.c.l.b16 %v1817
          %v2040 = vunpack.c.l.b16 %v1818
          %v2041 = vunpack.c.h.b16 %v1818
          %v2042 = vunpack.c.l.b16 %v1819
          %v2043 = vunpack.c.l.b16 %v1820
          %v2044 = vunpack.c.h.b16 %v1820
          %v2045 = vunpack.c.l.b16 %v1821
          %v2046 = vunpack.c.l.b16 %v1822
          %v2047 = vunpack.c.h.b16 %v1822
          %v2048 = vunpack.c.l.b16 %v1823
          %v2049 = vunpack.c.l.b16 %v1824
          %v2050 = vunpack.c.h.b16 %v1824
          %v2051 = vunpack.c.l.b16 %v1825
          %v2052 = vunpack.c.l.b16 %v1826
          %v2053 = vunpack.c.h.b16 %v1826
          %v2054 = vunpack.c.l.b16 %v1827
          %v2055 = vunpack.c.l.b16 %v1828
          %v2056 = vunpack.c.h.b16 %v1828
          %v2057 = vunpack.c.l.b16 %v1829
          %v2058 = vunpack.c.l.b16 %v1830
          %v2059 = vunpack.c.h.b16 %v1830
          %v2060 = vunpack.c.l.b16 %v1831
          %v2061 = vunpack.c.l.b16 %v1832
          %v2062 = vunpack.c.h.b16 %v1832
          %v2063 = vunpack.c.l.b16 %v1833
          %v2064 = vunpack.c.l.b16 %v1834
          %v2065 = vunpack.c.h.b16 %v1834
          %v2066 = vunpack.c.l.b16 %v1835
          %v2067 = vunpack.c.l.b16 %v1836
          %v2068 = vunpack.c.h.b16 %v1836
          %v2069 = vunpack.c.l.b16 %v1837
          %v2070 = vunpack.c.l.b16 %v1838
          %v2071 = vunpack.c.h.b16 %v1838
          %v2072 = vunpack.c.l.b16 %v1839
          %v2073 = vunpack.c.l.b16 %v1840
          %v2074 = vunpack.c.h.b16 %v1840
          %v2075 = vunpack.c.l.b16 %v1841
          %v2076 = vunpack.c.l.b16 %v1842
          %v2077 = vunpack.c.h.b16 %v1842
          %v2078 = vunpack.c.l.b16 %v1843
          %v2079 = vunpack.c.l.b16 %v1844
          %v2080 = vunpack.c.h.b16 %v1844
          %v2081 = vunpack.c.l.b16 %v1845
          %v2082 = vunpack.c.l.b16 %v1846
          %v2083 = vunpack.c.h.b16 %v1846
          %v2084 = vunpack.c.l.b16 %v1847
          %v2085 = vunpack.c.l.b16 %v1848
          %v2086 = vunpack.c.h.b16 %v1848
          %v2087 = vunpack.c.l.b16 %v1849
          %v2088 = vunpack.c.l.b16 %v1850
          %v2089 = vunpack.c.h.b16 %v1850
          %v2090 = vunpack.c.l.b16 %v1851
          %v2091 = vunpack.c.l.b16 %v1852
          %v2092 = vunpack.c.h.b16 %v1852
          %v2093 = vunpack.c.l.b16 %v1853
          %v2094 = vunpack.c.l.b16 %v1854
          %v2095 = vunpack.c.h.b16 %v1854
          %v2096 = vunpack.c.l.b16 %v1855
          %v2097 = vunpack.c.l.b16 %v1856
          %v2098 = vunpack.c.h.b16 %v1856
          %v2099 = vunpack.c.l.b16 %v1857
          %v2100 = vunpack.c.l.b16 %v1858
          %v2101 = vunpack.c.h.b16 %v1858
          %v2102 = vunpack.c.l.b16 %v1859
          %v2103 = vunpack.c.l.b16 %v1860
          %v2104 = vunpack.c.h.b16 %v1860
          %v2105 = vunpack.c.l.b16 %v1861
          %v2106 = vunpack.c.l.b16 %v1862
          %v2107 = vunpack.c.h.b16 %v1862
          %v2108 = vunpack.c.l.b16 %v1863
          %v2109 = vunpack.c.l.b16 %v1864
          %v2110 = vunpack.c.h.b16 %v1864
          %v2111 = vunpack.c.l.b16 %v1865
          %v2112 = vunpack.c.l.b16 %v1866
          %v2113 = vunpack.c.h.b16 %v1866
          %v2114 = vunpack.c.l.b16 %v1867
          %v2115 = vunpack.c.l.b16 %v1868
          %v2116 = vunpack.c.h.b16 %v1868
          %v2117 = vunpack.c.l.b16 %v1869
          %v2118 = vunpack.c.l.b16 %v1870
          %v2119 = vunpack.c.h.b16 %v1870
          %v2120 = vunpack.c.l.b16 %v1871
          %v2121 = vunpack.c.l.b16 %v1872
          %v2122 = vunpack.c.h.b16 %v1872
          %v2123 = vunpack.c.l.b16 %v1873
          %v2124 = vunpack.c.l.b16 %v1874
          %v2125 = vunpack.c.h.b16 %v1874
          %v2126 = vunpack.c.l.b16 %v1875
          %v2127 = vunpack.c.l.b16 %v1876
          %v2128 = vunpack.c.h.b16 %v1876
          %v2129 = vunpack.c.l.b16 %v1877
          %v2130 = vunpack.c.l.b16 %v1878
          %v2131 = vunpack.c.h.b16 %v1878
          %v2132 = vunpack.c.l.b16 %v1879
          %v2133 = vunpack.c.l.b16 %v1880
          %v2134 = vunpack.c.h.b16 %v1880
          %v2135 = vunpack.c.l.b16 %v1881
          %v2136 = vunpack.c.l.b16 %v1882
          %v2137 = vunpack.c.h.b16 %v1882
          %v2138 = vunpack.c.l.b16 %v1883
          %v2139 = vunpack.c.l.b16 %v1884
          %v2140 = vunpack.c.h.b16 %v1884
          %v2141 = vunpack.c.l.b16 %v1885
          %v2142 = vunpack.c.l.b16 %v1886
          %v2143 = vunpack.c.h.b16 %v1886
          %v2144 = vunpack.c.l.b16 %v1887
          %v2145 = vpack.c.b16 %v2004, %v2001
          %v2146 = vpack.c.b16 %v2005, %v2002
          %v2147 = vpack.c.b16 %v2006, %v2003
          %v2148 = vpack.c.b16 %v2010, %v2007
          %v2149 = vpack.c.b16 %v2011, %v2008
          %v2150 = vpack.c.b16 %v2012, %v2009
          %v2151 = vpack.c.b16 %v2016, %v2013
          %v2152 = vpack.c.b16 %v2017, %v2014
          %v2153 = vpack.c.b16 %v2018, %v2015
          %v2154 = vpack.c.b16 %v2022, %v2019
          %v2155 = vpack.c.b16 %v2023, %v2020
          %v2156 = vpack.c.b16 %v2024, %v2021
          %v2157 = vpack.c.b16 %v2028, %v2025
          %v2158 = vpack.c.b16 %v2029, %v2026
          %v2159 = vpack.c.b16 %v2030, %v2027
          %v2160 = vpack.c.b16 %v2034, %v2031
          %v2161 = vpack.c.b16 %v2035, %v2032
          %v2162 = vpack.c.b16 %v2036, %v2033
          %v2163 = vpack.c.b16 %v2040, %v2037
          %v2164 = vpack.c.b16 %v2041, %v2038
          %v2165 = vpack.c.b16 %v2042, %v2039
          %v2166 = vpack.c.b16 %v2046, %v2043
          %v2167 = vpack.c.b16 %v2047, %v2044
          %v2168 = vpack.c.b16 %v2048, %v2045
          %v2169 = vpack.c.b16 %v2052, %v2049
          %v2170 = vpack.c.b16 %v2053, %v2050
          %v2171 = vpack.c.b16 %v2054, %v2051
          %v2172 = vpack.c.b16 %v2058, %v2055
          %v2173 = vpack.c.b16 %v2059, %v2056
          %v2174 = vpack.c.b16 %v2060, %v2057
          %v2175 = vpack.c.b16 %v2064, %v2061
          %v2176 = vpack.c.b16 %v2065, %v2062
          %v2177 = vpack.c.b16 %v2066, %v2063
          %v2178 = vpack.c.b16 %v2070, %v2067
          %v2179 = vpack.c.b16 %v2071, %v2068
          %v2180 = vpack.c.b16 %v2072, %v2069
          %v2181 = vpack.c.b16 %v2076, %v2073
          %v2182 = vpack.c.b16 %v2077, %v2074
          %v2183 = vpack.c.b16 %v2078, %v2075
          %v2184 = vpack.c.b16 %v2082, %v2079
          %v2185 = vpack.c.b16 %v2083, %v2080
          %v2186 = vpack.c.b16 %v2084, %v2081
          %v2187 = vpack.c.b16 %v2088, %v2085
          %v2188 = vpack.c.b16 %v2089, %v2086
          %v2189 = vpack.c.b16 %v2090, %v2087
          %v2190 = vpack.c.b16 %v2094, %v2091
          %v2191 = vpack.c.b16 %v2095, %v2092
          %v2192 = vpack.c.b16 %v2096, %v2093
          %v2193 = vpack.c.b16 %v2100, %v2097
          %v2194 = vpack.c.b16 %v2101, %v2098
          %v2195 = vpack.c.b16 %v2102, %v2099
          %v2196 = vpack.c.b16 %v2106, %v2103
          %v2197 = vpack.c.b16 %v2107, %v2104
          %v2198 = vpack.c.b16 %v2108, %v2105
          %v2199 = vpack.c.b16 %v2112, %v2109
          %v2200 = vpack.c.b16 %v2113, %v2110
          %v2201 = vpack.c.b16 %v2114, %v2111
          %v2202 = vpack.c.b16 %v2118, %v2115
          %v2203 = vpack.c.b16 %v2119, %v2116
          %v2204 = vpack.c.b16 %v2120, %v2117
          %v2205 = vpack.c.b16 %v2124, %v2121
          %v2206 = vpack.c.b16 %v2125, %v2122
          %v2207 = vpack.c.b16 %v2126, %v2123
          %v2208 = vpack.c.b16 %v2130, %v2127
          %v2209 = vpack.c.b16 %v2131, %v2128
          %v2210 = vpack.c.b16 %v2132, %v2129
          %v2211 = vpack.c.b16 %v2136, %v2133
          %v2212 = vpack.c.b16 %v2137, %v2134
          %v2213 = vpack.c.b16 %v2138, %v2135
          %v2214 = vpack.c.b16 %v2142, %v2139
          %v2215 = vpack.c.b16 %v2143, %v2140
          %v2216 = vpack.c.b16 %v2144, %v2141
          %2289 = vmatprep.subr.bf16.mxu0 %v2146
          %2290 = vmatpush1.bf16.msra.mxu0 %v2145
          %2291 = vmatprep.subr.bf16.mxu0 %v2149
          %2292 = vmatpush1.bf16.msra.mxu0 %v2148
          %2293 = vmatprep.subr.bf16.mxu0 %v2152
          %2294 = vmatpush1.bf16.msra.mxu0 %v2151
          %2295 = vmatprep.subr.bf16.mxu0 %v2155
          %2296 = vmatpush1.bf16.msra.mxu0 %v2154
          %2297 = vmatprep.subr.bf16.mxu0 %v2158
          %2298 = vmatpush1.bf16.msra.mxu0 %v2157
          %2299 = vmatprep.subr.bf16.mxu0 %v2161
          %2300 = vmatpush1.bf16.msra.mxu0 %v2160
          %2301 = vmatprep.subr.bf16.mxu0 %v2164
          %2302 = vmatpush1.bf16.msra.mxu0 %v2163
          %2303 = vmatprep.subr.bf16.mxu0 %v2167
          %2304 = vmatpush1.bf16.msra.mxu0 %v2166
          %2305 = vmatprep.subr.bf16.mxu0 %v2170
          %2306 = vmatpush1.bf16.msra.mxu0 %v2169
          %2307 = vmatprep.subr.bf16.mxu0 %v2173
          %2308 = vmatpush1.bf16.msra.mxu0 %v2172
          %2309 = vmatprep.subr.bf16.mxu0 %v2176
          %2310 = vmatpush1.bf16.msra.mxu0 %v2175
          %2311 = vmatprep.subr.bf16.mxu0 %v2179
          %2312 = vmatpush1.bf16.msra.mxu0 %v2178
          %2313 = vmatprep.subr.bf16.mxu0 %v2182
          %2314 = vmatpush1.bf16.msra.mxu0 %v2181
          %2315 = vmatprep.subr.bf16.mxu0 %v2185
          %2316 = vmatpush1.bf16.msra.mxu0 %v2184
          %2317 = vmatprep.subr.bf16.mxu0 %v2188
          %2318 = vmatpush1.bf16.msra.mxu0 %v2187
          %2319 = vmatprep.subr.bf16.mxu0 %v2191
          %2320 = vmatpush1.bf16.msra.mxu0 %v2190
          %2321 = vmatprep.mubr.bf16.mxu0 %v1790
          %2322 = vmatmul.mubr.bf16.gmra.mrb[0].mxu0 %v1789
          %v2323 = vpop.f32.mrb[0].mxu0
          %v2324 = vadd.f32 %v1893, %v2323
          %v2325 = vpop.f32.mrb[0].mxu0
          %v2326 = vadd.f32 %v1897, %v2325
          %v2327 = vpop.f32.mrb[0].mxu0
          %v2328 = vpop.f32.mrb[0].mxu0
          %2329 = vdwg.mxu0
          %2330 = vmatprep.subr.bf16.mxu0 %v2194
          %2331 = vmatpush1.bf16.msra.mxu0 %v2193
          %2332 = vmatprep.subr.bf16.mxu0 %v2197
          %2333 = vmatpush1.bf16.msra.mxu0 %v2196
          %2334 = vmatprep.subr.bf16.mxu0 %v2200
          %2335 = vmatpush1.bf16.msra.mxu0 %v2199
          %2336 = vmatprep.subr.bf16.mxu0 %v2203
          %2337 = vmatpush1.bf16.msra.mxu0 %v2202
          %2338 = vmatprep.subr.bf16.mxu0 %v2206
          %2339 = vmatpush1.bf16.msra.mxu0 %v2205
          %2340 = vmatprep.subr.bf16.mxu0 %v2209
          %2341 = vmatpush1.bf16.msra.mxu0 %v2208
          %2342 = vmatprep.subr.bf16.mxu0 %v2212
          %2343 = vmatpush1.bf16.msra.mxu0 %v2211
          %2344 = vmatprep.subr.bf16.mxu0 %v2215
          %2345 = vmatpush1.bf16.msra.mxu0 %v2214
          %2346 = vmatprep.subr.bf16.mxu0 0
          %2347 = vmatpush1.bf16.msra.mxu0 0
          %2348 = vmatprep.subr.bf16.mxu0 0
          %2349 = vmatpush1.bf16.msra.mxu0 0
          %2350 = vmatprep.subr.bf16.mxu0 0
          %2351 = vmatpush1.bf16.msra.mxu0 0
          %2352 = vmatprep.subr.bf16.mxu0 0
          %2353 = vmatpush1.bf16.msra.mxu0 0
          %2354 = vmatprep.subr.bf16.mxu0 0
          %2355 = vmatpush1.bf16.msra.mxu0 0
          %2356 = vmatprep.subr.bf16.mxu0 0
          %2357 = vmatpush1.bf16.msra.mxu0 0
          %2358 = vmatprep.subr.bf16.mxu0 0
          %2359 = vmatpush1.bf16.msra.mxu0 0
          %2360 = vmatprep.subr.bf16.mxu0 0
          %2361 = vmatpush1.bf16.msra.mxu0 0
          %2362 = vmatprep.mubr.bf16.mxu0 0
          %2363 = vmatmul.mubr.bf16.gmra.mrb[0].mxu0 %v1791
          %v2364 = vpop.f32.mrb[0].mxu0
          %v2365 = vadd.f32 %v2324, %v2364
          %v2366 = vpop.f32.mrb[0].mxu0
          %v2367 = vadd.f32 %v2326, %v2366
          %v2368 = vpop.f32.mrb[0].mxu0
          %v2369 = vpop.f32.mrb[0].mxu0
          %2370 = vdwg.mxu0
          %2371 = vmatprep.subr.bf16.mxu0 0
          %2372 = vmatpush1.bf16.msra.mxu0 %v2147
          %2373 = vmatprep.subr.bf16.mxu0 0
          %2374 = vmatpush1.bf16.msra.mxu0 %v2150
          %2375 = vmatprep.subr.bf16.mxu0 0
          %2376 = vmatpush1.bf16.msra.mxu0 %v2153
          %2377 = vmatprep.subr.bf16.mxu0 0
          %2378 = vmatpush1.bf16.msra.mxu0 %v2156
          %2379 = vmatprep.subr.bf16.mxu0 0
          %2380 = vmatpush1.bf16.msra.mxu0 %v2159
          %2381 = vmatprep.subr.bf16.mxu0 0
          %2382 = vmatpush1.bf16.msra.mxu0 %v2162
          %2383 = vmatprep.subr.bf16.mxu0 0
          %2384 = vmatpush1.bf16.msra.mxu0 %v2165
          %2385 = vmatprep.subr.bf16.mxu0 0
          %2386 = vmatpush1.bf16.msra.mxu0 %v2168
          %2387 = vmatprep.subr.bf16.mxu0 0
          %2388 = vmatpush1.bf16.msra.mxu0 %v2171
          %2389 = vmatprep.subr.bf16.mxu0 0
          %2390 = vmatpush1.bf16.msra.mxu0 %v2174
          %2391 = vmatprep.subr.bf16.mxu0 0
          %2392 = vmatpush1.bf16.msra.mxu0 %v2177
          %2393 = vmatprep.subr.bf16.mxu0 0
          %2394 = vmatpush1.bf16.msra.mxu0 %v2180
          %2395 = vmatprep.subr.bf16.mxu0 0
          %2396 = vmatpush1.bf16.msra.mxu0 %v2183
          %2397 = vmatprep.subr.bf16.mxu0 0
          %2398 = vmatpush1.bf16.msra.mxu0 %v2186
          %2399 = vmatprep.subr.bf16.mxu0 0
          %2400 = vmatpush1.bf16.msra.mxu0 %v2189
          %2401 = vmatprep.subr.bf16.mxu0 0
          %2402 = vmatpush1.bf16.msra.mxu0 %v2192
          %2403 = vmatprep.mubr.bf16.mxu0 %v1790
          %2404 = vmatmul.mubr.bf16.gmra.mrb[0].mxu0 %v1789
          %v2405 = vpop.f32.mrb[0].mxu0
          %v2406 = vadd.f32 %v1901, %v2405
          %v2407 = vpop.f32.mrb[0].mxu0
          %v2408 = vpop.f32.mrb[0].mxu0
          %v2409 = vpop.f32.mrb[0].mxu0
          %2410 = vdwg.mxu0
          %2411 = vmatprep.subr.bf16.mxu0 0
          %2412 = vmatpush1.bf16.msra.mxu0 %v2195
          %2413 = vmatprep.subr.bf16.mxu0 0
          %2414 = vmatpush1.bf16.msra.mxu0 %v2198
          %2415 = vmatprep.subr.bf16.mxu0 0
          %2416 = vmatpush1.bf16.msra.mxu0 %v2201
          %2417 = vmatprep.subr.bf16.mxu0 0
          %2418 = vmatpush1.bf16.msra.mxu0 %v2204
          %2419 = vmatprep.subr.bf16.mxu0 0
          %2420 = vmatpush1.bf16.msra.mxu0 %v2207
          %2421 = vmatprep.subr.bf16.mxu0 0
          %2422 = vmatpush1.bf16.msra.mxu0 %v2210
          %2423 = vmatprep.subr.bf16.mxu0 0
          %2424 = vmatpush1.bf16.msra.mxu0 %v2213
          %2425 = vmatprep.subr.bf16.mxu0 0
          %2426 = vmatpush1.bf16.msra.mxu0 %v2216
          %2427 = vmatprep.subr.bf16.mxu0 0
          %2428 = vmatpush1.bf16.msra.mxu0 0
          %2429 = vmatprep.subr.bf16.mxu0 0
          %2430 = vmatpush1.bf16.msra.mxu0 0
          %2431 = vmatprep.subr.bf16.mxu0 0
          %2432 = vmatpush1.bf16.msra.mxu0 0
          %2433 = vmatprep.subr.bf16.mxu0 0
          %2434 = vmatpush1.bf16.msra.mxu0 0
          %2435 = vmatprep.subr.bf16.mxu0 0
          %2436 = vmatpush1.bf16.msra.mxu0 0
          %2437 = vmatprep.subr.bf16.mxu0 0
          %2438 = vmatpush1.bf16.msra.mxu0 0
          %2439 = vmatprep.subr.bf16.mxu0 0
          %2440 = vmatpush1.bf16.msra.mxu0 0
          %2441 = vmatprep.subr.bf16.mxu0 0
          %2442 = vmatpush1.bf16.msra.mxu0 0
          %2443 = vmatprep.mubr.bf16.mxu0 0
          %2444 = vmatmul.mubr.bf16.gmra.mrb[0].mxu0 %v1791
          %v2445 = vpop.f32.mrb[0].mxu0
          %v2446 = vadd.f32 %v2406, %v2445
          %v2447 = vpop.f32.mrb[0].mxu0
          %v2448 = vpop.f32.mrb[0].mxu0
          %v2449 = vpop.f32.mrb[0].mxu0
          %2450 = vdwg.mxu0
          %2451 = vst [vmem:[#allocation19] sm:$0xff] %v2365
          %2452 = vst [vmem:[#allocation19 + $0x8] sm:$0xff] %v2367
          %2453 = vst [vmem:[#allocation19 + $0x10] sm:$0xff] %v2446
        $region104: #{simclr_forward.1} parent=63 // pred_fallthru
          _
        %s2454 = sand.u32 %s293, 1
        %s2455 = scalar_lea.sflag [#allocation6], %s2454
        %s2456 = sand.u32 %s293, 1
        %s2457 = smul.addr %s2456, 128
        %s2458 = scalar_lea.vmem [#allocation16], %s2457
        %s2459 = sand.u32 %s34, 1
        %s2460 = scalar_lea.sflag [#allocation18], %s2459
        %s2461 = sand.u32 %s319, 1
        %s2462 = smul.addr %s2461, 8
        %s2463 = scalar_lea.vmem [#allocation17], %s2462
        // Predicated region
        $region105: #{simclr_forward.1} parent=63 // pred_check
          %p2464 = pneg %p303
        $region106: #{simclr_forward.1} parent=63 // pred_check_branch
          %2466 = sbr.rel (%p2464) target = $region108
        $region107: #{simclr_forward.1} parent=63 // pred_region
          %s2468 = ssub.s32 2048, 2048
          %2469 = vsyncadd %s2455, %s2468
          %s2470 = smul.addr %s34, 128
          %s2471 = scalar_lea.hbm %s11, %s2470
          %s2472 = sshll.u32 %s2458, 4
          %s2473 = int_to_ptr.vmem [resolvable:$true] %s2472
          %2478 = dma.vmem_to_hbm [thread:$0]  %s2473, 2048, %s2471, %s2455, 128, 384, 8
        $region108: #{simclr_forward.1} parent=63 // pred_fallthru
          _
        // Predicated region
        $region109: #{simclr_forward.1} parent=63 // pred_check
          %p2479 = pneg %p329
        $region110: #{simclr_forward.1} parent=63 // pred_check_branch
          %2481 = sbr.rel (%p2479) target = $region112
        $region111: #{simclr_forward.1} parent=63 // pred_region
          %s2483 = ssub.s32 128, 128
          %2484 = vsyncadd %s2460, %s2483
          %s2485 = smul.addr %s34, 128
          %s2486 = scalar_lea.hbm %s12, %s2485
          %s2488 = sshll.u32 %s2463, 4
          %s2489 = int_to_ptr.vmem [resolvable:$true] %s2488
          %2491 = dma.vmem_to_hbm [thread:$0]  %s2489, 128, %s2486, %s2460
        $region112: #{simclr_forward.1} parent=63 // pred_fallthru
          _
        // Predicated region
        $region113: #{simclr_forward.1} parent=63 // pred_check
          %p2492 = pneg %p350
        $region114: #{simclr_forward.1} parent=63 // pred_check_branch
          %2494 = sbr.rel (%p2492) target = $region116
        $region115: #{simclr_forward.1} parent=63 // pred_region
          %s2496 = ssub.s32 384, 384
          %2497 = vsyncadd [#allocation18], %s2496
          %s2499 = sshll.u32 [#allocation19], 4
          %s2500 = int_to_ptr.vmem [resolvable:$true] %s2499
          %2502 = dma.vmem_to_hbm [thread:$0]  %s2500, 384, %s13, [#allocation18]
        $region116: #{simclr_forward.1} parent=63 // pred_fallthru
          _
        // Predicated region
        $region117: #{simclr_forward.1} parent=63 // pred_check
          %p2503 = pneg %p350
        $region118: #{simclr_forward.1} parent=63 // pred_check_branch
          %2505 = sbr.rel (%p2503) target = $region120
        $region119: #{simclr_forward.1} parent=63 // pred_region
          %2506 = dma.done [#allocation18], 384
        $region120: #{simclr_forward.1} parent=63 // pred_fallthru
          _
      $region64: #{simclr_forward.1} parent=5 // pred_fallthru
        _
      %p2507 = scmp.le.s32.totalorder 2, %s29
      // Predicated region
      $region121: #{simclr_forward.1} parent=5 // pred_check
        %p2508 = pneg %p2507
      $region122: #{simclr_forward.1} parent=5 // pred_check_branch
        %2510 = sbr.rel (%p2508) target = $region124
      $region123: #{simclr_forward.1} parent=5 // pred_region
        %s2511 = ssub.s32 %s29, 2
        // Predicated region
        $region125: #{simclr_forward.1} parent=123 // pred_check
          %p2512 = pneg %p309
        $region126: #{simclr_forward.1} parent=123 // pred_check_branch
          %2514 = sbr.rel (%p2512) target = $region128
        $region127: #{simclr_forward.1} parent=123 // pred_region
          %s2515 = sand.u32 %s294, 1
          %s2516 = scalar_lea.sflag [#allocation6], %s2515
          %s2517 = sand.u32 %s294, 1
          %s2518 = smul.addr %s2517, 128
          %s2519 = scalar_lea.vmem [#allocation16], %s2518
          %2520 = dma.done %s2516, 2048
        $region128: #{simclr_forward.1} parent=123 // pred_fallthru
          _
        // Predicated region
        $region129: #{simclr_forward.1} parent=123 // pred_check
          %p2521 = pneg %p335
        $region130: #{simclr_forward.1} parent=123 // pred_check_branch
          %2523 = sbr.rel (%p2521) target = $region132
        $region131: #{simclr_forward.1} parent=123 // pred_region
          %s2524 = sand.u32 %s35, 1
          %s2525 = scalar_lea.sflag [#allocation18], %s2524
          %s2526 = sand.u32 %s320, 1
          %s2527 = smul.addr %s2526, 8
          %s2528 = scalar_lea.vmem [#allocation17], %s2527
          %2529 = dma.done %s2525, 128
        $region132: #{simclr_forward.1} parent=123 // pred_fallthru
          _
      $region124: #{simclr_forward.1} parent=5 // pred_fallthru
        _
    $region6: #{simclr_forward.1} parent=1 // loop_footer
      %s33 = sadd.s32 1, %s29
    $region7: #{simclr_forward.1} parent=1 // loop_footer_branch
      %28 = sbr.rel target = $region3
    $region8: #{simclr_forward.1} parent=1 // loop_exit
      _
    %2530 = vsyncpa [#allocation5], 1
    %s2531 = scalar_lea.sflag [#allocation5], 1
    %2532 = vsyncpa %s2531, 1
    %2533 = vsyncpa [#allocation10], 1
    %2534 = vsyncpa [#allocation6], 1
    %s2535 = scalar_lea.sflag [#allocation6], 1
    %2536 = vsyncpa %s2535, 1
    %2537 = vsyncpa [#allocation18], 1
    %s2538 = scalar_lea.sflag [#allocation18], 1
    %2539 = vsyncpa %s2538, 1
    %2540 = vsyncpa [#allocation7], 1
    %s2541 = scalar_lea.sflag [#allocation7], 1
    %2542 = vsyncpa %s2541, 1

</llo_original>
